<compile_context>
chip_gen: v5e
topology: v5e:2x2
jax: 0.10.0
libtpu: 0.0.40
codegen_flags: <defaults>
</compile_context>

<pallas_src>
import jax
import jax.numpy as jnp
from jax.experimental import pallas as pl
from jax.experimental.pallas import tpu as pltpu

# ---- static model configuration (small but TPU-friendly) ----
B = 8          # batch
T = 8          # sequence length
N_OUT = 16     # vocabulary / output classes (N_outputs)
D0 = 32        # layer_sizes['decoder_embedding'][0]  (nn.Embedding dim)
D1 = 32        # layer_sizes['decoder_embedding'][1]  (nn.Linear dim); == H for scratch reuse
H = 32         # layer_sizes['decoder_rnn'] hidden size (all layers equal, as required)
L = 2          # number of decoder_rnn layers
P1 = 32        # layer_sizes['decoder_projection'][0]
SOS_ID = 0
LANES = 4 * H  # 128-lane width used for the merged param pack and the output

assert D1 == H, "packing & in-place scratch reuse assume RNN input size == hidden size"
assert max(D0, D1, P1, N_OUT) <= LANES


def _align8(x):
    return (x + 7) // 8 * 8


# 8-row-aligned section offsets inside the merged (MLP_ROWS, 128) parameter pack.
R_EMB = 0                        # embedding table       (N_OUT rows,  D0 lanes)
R_W1 = _align8(R_EMB + N_OUT)    # embedding Linear W1   (D0 rows,     D1 lanes)
R_B1 = _align8(R_W1 + D0)        # embedding Linear b1   (1 row,       D1 lanes)
R_WP = _align8(R_B1 + 1)         # projection hidden Wp1 (H rows,      P1 lanes)
R_BP = _align8(R_WP + H)         # projection hidden bp1 (1 row,       P1 lanes)
R_WO = _align8(R_BP + 1)         # projection output Wo  (P1 rows,     N_OUT lanes, zero-padded)
R_BO = _align8(R_WO + P1)        # projection output bo  (1 row,       N_OUT lanes, zero-padded)
MLP_ROWS = _align8(R_BO + 1)


def decoder_kernel(onehot_ref, state0_ref, mlp_ref, lstm_ref, out_ref, seq_ref, gx_ref):
    """Embedding MLP -> L-layer LSTM -> projection MLP, all VMEM resident.

    onehot_ref : (T*B, V)            time-major one-hot token ids
    state0_ref : (2, L, B, H)        stacked (h0, c0) encoder final states
    mlp_ref    : (MLP_ROWS, 128)     merged [Emb ; W1 ; b1 ; Wp1 ; bp1 ; Wo ; bo] pack
    lstm_ref   : (L, 2H+1, 4H)       per layer [W_ih^T ; W_hh^T ; b_ih + b_hh]
    out_ref    : (T*B, 128)          lane-dense output (first N_OUT lanes valid)
    seq_ref    : (T*B, H)            VMEM scratch, reused in place by every stage
    gx_ref     : (T*B, 4H)           VMEM scratch for the hoisted input->gate projection
    """
    # ---- decoder_embedding stack: one (T*B)-row MXU matmul per layer ----
    emb_tbl = mlp_ref[R_EMB:R_EMB + N_OUT, :][:, 0:D0]           # (V, D0)
    w1 = mlp_ref[R_W1:R_W1 + D0, :][:, 0:D1]                     # (D0, D1)
    b1 = mlp_ref[R_B1:R_B1 + 1, :][:, 0:D1]                      # (1, D1)
    x0 = jnp.maximum(jnp.dot(onehot_ref[...], emb_tbl,
                             preferred_element_type=jnp.float32), 0.0)
    seq_ref[...] = jnp.maximum(
        jnp.dot(x0, w1, preferred_element_type=jnp.float32) + b1, 0.0)
    # TODO(synk): FF_dropout / RNN_dropout are identity here (eval-mode forward).

    # ---- gate-nonlinearity constants, hoisted & pre-broadcast to a full (B, 4H) vreg ----
    # sigmoid(x) = 0.5 * tanh(0.5 * x) + 0.5 for the i/f/o lanes, plain tanh for g lanes.
    lane = jax.lax.broadcasted_iota(jnp.int32, (B, 4 * H), 1)
    is_g = (lane >= 2 * H) & (lane < 3 * H)
    scale = jnp.where(is_g, 1.0, 0.5).astype(jnp.float32)        # tanh arg & output scale
    shift = jnp.where(is_g, 0.0, 0.5).astype(jnp.float32)

    # ---- multi-layer LSTM (PyTorch gate order i, f, g, o), in place over seq_ref ----
    for l in range(L):                                           # L is tiny and static
        layer = lstm_ref[l]                                      # (2H+1, 4H)
        w_ih = layer[0:H, :]                                     # (H, 4H)
        w_hh = layer[H:2 * H, :]                                 # (H, 4H)
        b_g = layer[2 * H:2 * H + 1, :]                          # (1, 4H)

        # Hoisted input->gate projection (+ folded bias): one dense MXU matmul per layer,
        # moving half the gate FLOPs (and the bias broadcast) off the serial time loop.
        gx_ref[...] = jnp.dot(seq_ref[...], w_ih,
                              preferred_element_type=jnp.float32) + b_g

        h_init = state0_ref[0, l, :, :]                          # (B, H)
        c_init = state0_ref[1, l, :, :]                          # (B, H)

        def step(t, carry, w_hh=w_hh, scale=scale, shift=shift):
            h, c = carry
            r = pl.multiple_of(t * B, 8)                         # B == 8 keeps rows sublane aligned
            gates = gx_ref[pl.ds(r, B), :] + jnp.dot(
                h, w_hh, preferred_element_type=jnp.float32)     # (B, 4H), one vreg
            act = scale * jnp.tanh(gates * scale) + shift        # i,f,o = sigmoid; g = tanh
            i_g = act[:, 0:H]
            f_g = act[:, H:2 * H]
            g_g = act[:, 2 * H:3 * H]
            o_g = act[:, 3 * H:4 * H]
            c = f_g * c + i_g * g_g
            h = o_g * jnp.tanh(c)
            seq_ref[pl.ds(r, B), :] = h                          # layer output overwrites its input
            return h, c

        jax.lax.fori_loop(0, T, step, (h_init, c_init), unroll=True)

    # ---- decoder_projection (RNNProjection): relu hidden layer + final linear ----
    wp = mlp_ref[R_WP:R_WP + H, :][:, 0:P1]                      # (H, P1)
    bp = mlp_ref[R_BP:R_BP + 1, :][:, 0:P1]                      # (1, P1)
    wo = mlp_ref[R_WO:R_WO + P1, :]                              # (P1, 128) zero-padded cols
    bo = mlp_ref[R_BO:R_BO + 1, :]                               # (1, 128) zero-padded cols
    hidden = jnp.maximum(jnp.dot(seq_ref[...], wp,
                                 preferred_element_type=jnp.float32) + bp, 0.0)
    out_ref[...] = jnp.dot(hidden, wo, preferred_element_type=jnp.float32) + bo


def pack_params(p):
    """Fold biases in as extra weight rows; merge all non-LSTM params into one
    128-lane, 8-row-aligned buffer -> 4 kernel inputs total (vs ~13 raw tensors)."""
    mlp = jnp.zeros((MLP_ROWS, LANES), jnp.float32)
    mlp = mlp.at[R_EMB:R_EMB + N_OUT, 0:D0].set(p["emb"])
    mlp = mlp.at[R_W1:R_W1 + D0, 0:D1].set(p["w1"])
    mlp = mlp.at[R_B1, 0:D1].set(p["b1"])
    mlp = mlp.at[R_WP:R_WP + H, 0:P1].set(p["wp1"])
    mlp = mlp.at[R_BP, 0:P1].set(p["bp1"])
    mlp = mlp.at[R_WO:R_WO + P1, 0:N_OUT].set(p["wo"])
    mlp = mlp.at[R_BO, 0:N_OUT].set(p["bo"])
    lstm = jnp.concatenate(
        [p["w_ih"], p["w_hh"], (p["b_ih"] + p["b_hh"])[:, None, :]], axis=1)  # (L, 2H+1, 4H)
    return mlp, lstm


@jax.jit
def decoder_forward(targets, h0, c0, params):
    """DecoderRNN.forward with `targets` given (teacher forcing), eval mode.

    targets: (B, T) int32 token ids; h0, c0: (L, B, H) encoder final LSTM states.
    Returns natural_params: (B, T, N_OUT).
    """
    nB, nT = targets.shape
    # -- layout plumbing stays in the wrapper (free XLA work, no in-kernel reshapes) --
    x_ids = jnp.roll(targets, 1, axis=1).at[:, 0].set(SOS_ID)       # teacher-forcing shift
    ids_tm = x_ids.T.reshape(-1)                                    # (T*B,) time-major flatten
    onehot = jax.nn.one_hot(ids_tm, N_OUT, dtype=jnp.float32)       # embedding lookup as MXU matmul
    state0 = jnp.stack([h0, c0], axis=0)                            # (2, L, B, H) -> one DMA
    mlp_pack, lstm_pack = pack_params(params)

    out = pl.pallas_call(
        decoder_kernel,
        out_shape=jax.ShapeDtypeStruct((nT * nB, LANES), jnp.float32),  # lane-dense output
        # tiny problem: everything resident in VMEM, single invocation (no grid).
        # TODO(synk): at realistic T/B/vocab, drop the one-hot, scalar-prefetch token ids
        #             (PrefetchScalarGridSpec) + gather embedding rows, tile T on an
        #             "arbitrary" grid axis carrying h/c in scratch, add a "parallel"
        #             batch axis for v7x megacore, and set vmem_limit_bytes.
        in_specs=[pl.BlockSpec(memory_space=pltpu.MemorySpace.VMEM)] * 4,
        out_specs=pl.BlockSpec(memory_space=pltpu.MemorySpace.VMEM),
        scratch_shapes=[pltpu.VMEM((nT * nB, H), jnp.float32),
                        pltpu.VMEM((nT * nB, 4 * H), jnp.float32)],
    )(onehot, state0, mlp_pack, lstm_pack)

    out = out[:, :N_OUT]                                            # drop zero-padded lanes
    return out.reshape(nT, nB, N_OUT).transpose(1, 0, 2)            # (B, T, N_out)


def init_params(key):
    """Deterministic init mimicking PyTorch defaults (Embedding ~ N(0,1), Linear/LSTM ~ U)."""
    ks = jax.random.split(key, 11)

    def u(k, shape, fan_in):
        b = 1.0 / jnp.sqrt(jnp.float32(fan_in))
        return jax.random.uniform(k, shape, jnp.float32, -b, b)

    return dict(
        emb=jax.random.normal(ks[0], (N_OUT, D0), jnp.float32),
        w1=u(ks[1], (D0, D1), D0), b1=u(ks[2], (D1,), D0),
        w_ih=u(ks[3], (L, D1, 4 * H), H), w_hh=u(ks[4], (L, H, 4 * H), H),
        b_ih=u(ks[5], (L, 4 * H), H), b_hh=u(ks[6], (L, 4 * H), H),
        wp1=u(ks[7], (H, P1), H), bp1=u(ks[8], (P1,), H),
        wo=u(ks[9], (P1, N_OUT), P1), bo=u(ks[10], (N_OUT,), P1),
    )


def reference(targets, h0, c0, p):
    """Pure-JAX transliteration of DecoderRNN.forward (targets branch, eval mode)."""
    x_ids = jnp.roll(targets, 1, axis=1).at[:, 0].set(SOS_ID)
    x = jnp.maximum(p["emb"][x_ids], 0.0)                           # relu(Embedding)
    x = jnp.maximum(x @ p["w1"] + p["b1"], 0.0)                     # relu(Linear)
    x = x.transpose(1, 0, 2)                                        # (T, B, D1)
    for l in range(L):
        h, c = h0[l], c0[l]
        outs = []
        for t in range(x.shape[0]):
            gates = (x[t] @ p["w_ih"][l] + h @ p["w_hh"][l]
                     + p["b_ih"][l] + p["b_hh"][l])
            i_g = jax.nn.sigmoid(gates[:, 0:H])
            f_g = jax.nn.sigmoid(gates[:, H:2 * H])
            g_g = jnp.tanh(gates[:, 2 * H:3 * H])
            o_g = jax.nn.sigmoid(gates[:, 3 * H:4 * H])
            c = f_g * c + i_g * g_g
            h = o_g * jnp.tanh(c)
            outs.append(h)
        x = jnp.stack(outs, axis=0)
    y = jnp.maximum(x @ p["wp1"] + p["bp1"], 0.0)
    y = y @ p["wo"] + p["bo"]                                       # (T, B, N_out)
    return y.transpose(1, 0, 2)                                     # (B, T, N_out)


if __name__ == "__main__":
    root = jax.random.PRNGKey(0)
    k_tgt, k_h, k_c, k_p = jax.random.split(root, 4)

    targets = jax.random.randint(k_tgt, (B, T), 0, N_OUT, dtype=jnp.int32)
    h0 = jax.random.normal(k_h, (L, B, H), jnp.float32)             # encoder final h
    c0 = jax.random.normal(k_c, (L, B, H), jnp.float32)             # encoder final c
    params = init_params(k_p)

    out = decoder_forward(targets, h0, c0, params)
    out = jax.block_until_ready(out)

    ref = reference(targets, h0, c0, params)

    assert out.shape == (B, T, N_OUT), out.shape
    err = float(jnp.max(jnp.abs(out - ref)))
    # tanh-based sigmoid is mathematically exact; tolerance covers f32 transcendental diffs.
    assert jnp.allclose(out, ref, atol=1e-4, rtol=1e-4), err

    print("KERNEL_OK")
</pallas_src>

<mosaic_0001>
module attributes {stable_mosaic.version = 11 : i64} {
  func.func @decoder_kernel(%arg0: memref<64x16xf32, #tpu.memory_space<vmem>>, %arg1: memref<2x2x8x32xf32, #tpu.memory_space<vmem>>, %arg2: memref<136x128xf32, #tpu.memory_space<vmem>>, %arg3: memref<2x65x128xf32, #tpu.memory_space<vmem>>, %arg4: memref<64x128xf32, #tpu.memory_space<vmem>>, %arg5: memref<64x32xf32, #tpu.memory_space<vmem>>, %arg6: memref<64x128xf32, #tpu.memory_space<vmem>>) attributes {dimension_semantics = [], scalar_prefetch = 0 : i64, scratch_operands = 2 : i64, tpu.core_type = #tpu.core_type<tc>} {
    %c0 = arith.constant 0 : index
    %c0_0 = arith.constant 0 : index
    %0 = vector.load %arg2[%c0, %c0_0] : memref<136x128xf32, #tpu.memory_space<vmem>>, vector<16x128xf32>
    %1 = vector.extract_strided_slice %0 {offsets = [0, 0], sizes = [16, 32], strides = [1, 1]} : vector<16x128xf32> to vector<16x32xf32>
    %c16 = arith.constant 16 : index
    %c0_1 = arith.constant 0 : index
    %2 = vector.load %arg2[%c16, %c0_1] : memref<136x128xf32, #tpu.memory_space<vmem>>, vector<32x128xf32>
    %3 = vector.extract_strided_slice %2 {offsets = [0, 0], sizes = [32, 32], strides = [1, 1]} : vector<32x128xf32> to vector<32x32xf32>
    %c48 = arith.constant 48 : index
    %c0_2 = arith.constant 0 : index
    %4 = vector.load %arg2[%c48, %c0_2] : memref<136x128xf32, #tpu.memory_space<vmem>>, vector<1x128xf32>
    %5 = vector.extract_strided_slice %4 {offsets = [0, 0], sizes = [1, 32], strides = [1, 1]} : vector<1x128xf32> to vector<1x32xf32>
    %c0_3 = arith.constant 0 : index
    %c0_4 = arith.constant 0 : index
    %6 = vector.load %arg0[%c0_3, %c0_4] : memref<64x16xf32, #tpu.memory_space<vmem>>, vector<64x16xf32>
    %cst = arith.constant dense<0.000000e+00> : vector<64x32xf32>
    %7 = tpu.matmul %6, %1, %cst {dimension_numbers = #tpu.dot_dimension_numbers<[1], [0], [0], [1], [0, 0, 1, 1], [], []>} : vector<64x16xf32>, vector<16x32xf32>, vector<64x32xf32> -> vector<64x32xf32>
    %cst_5 = arith.constant 0.000000e+00 : f32
    %8 = vector.broadcast %cst_5 : f32 to vector<64x32xf32>
    %9 = arith.maximumf %7, %8 : vector<64x32xf32>
    %cst_6 = arith.constant dense<0.000000e+00> : vector<64x32xf32>
    %10 = tpu.matmul %9, %3, %cst_6 {dimension_numbers = #tpu.dot_dimension_numbers<[1], [0], [0], [1], [0, 0, 1, 1], [], []>} : vector<64x32xf32>, vector<32x32xf32>, vector<64x32xf32> -> vector<64x32xf32>
    %11 = vector.broadcast %5 : vector<1x32xf32> to vector<64x32xf32>
    %12 = arith.addf %10, %11 : vector<64x32xf32>
    %cst_7 = arith.constant 0.000000e+00 : f32
    %13 = vector.broadcast %cst_7 : f32 to vector<64x32xf32>
    %14 = arith.maximumf %12, %13 : vector<64x32xf32>
    %c0_8 = arith.constant 0 : index
    %c0_9 = arith.constant 0 : index
    %15 = vector.load %arg5[%c0_8, %c0_9] : memref<64x32xf32, #tpu.memory_space<vmem>>, vector<64x32xf32>
    tpu.vector_store %arg5[%c0_8, %c0_9], %14 {strides = array<i32>} : memref<64x32xf32, #tpu.memory_space<vmem>>, vector<64x32xf32>,
    %16 = tpu.iota {dimensions = array<i32: 1>} : vector<8x128xi32>
    %c64_i32 = arith.constant 64 : i32
    %17 = vector.broadcast %c64_i32 : i32 to vector<8x128xi32>
    %18 = arith.cmpi sge, %16, %17 : vector<8x128xi32>
    %c96_i32 = arith.constant 96 : i32
    %19 = vector.broadcast %c96_i32 : i32 to vector<8x128xi32>
    %20 = arith.cmpi slt, %16, %19 : vector<8x128xi32>
    %21 = arith.andi %18, %20 : vector<8x128xi1>
    %cst_10 = arith.constant 1.000000e+00 : f32
    %cst_11 = arith.constant 5.000000e-01 : f32
    %22 = vector.broadcast %cst_10 : f32 to vector<8x128xf32>
    %23 = vector.broadcast %cst_11 : f32 to vector<8x128xf32>
    %24 = arith.select %21, %22, %23 : vector<8x128xi1>, vector<8x128xf32>
    %cst_12 = arith.constant 0.000000e+00 : f32
    %cst_13 = arith.constant 5.000000e-01 : f32
    %25 = vector.broadcast %cst_12 : f32 to vector<8x128xf32>
    %26 = vector.broadcast %cst_13 : f32 to vector<8x128xf32>
    %27 = arith.select %21, %25, %26 : vector<8x128xi1>, vector<8x128xf32>
    %c0_14 = arith.constant 0 : index
    %c0_15 = arith.constant 0 : index
    %c0_16 = arith.constant 0 : index
    %28 = vector.load %arg3[%c0_14, %c0_15, %c0_16] : memref<2x65x128xf32, #tpu.memory_space<vmem>>, vector<1x65x128xf32>
    %29 = vector.shape_cast %28 : vector<1x65x128xf32> to vector<65x128xf32>
    %30 = vector.extract_strided_slice %29 {offsets = [0, 0], sizes = [32, 128], strides = [1, 1]} : vector<65x128xf32> to vector<32x128xf32>
    %31 = vector.extract_strided_slice %29 {offsets = [32, 0], sizes = [32, 128], strides = [1, 1]} : vector<65x128xf32> to vector<32x128xf32>
    %32 = vector.extract_strided_slice %29 {offsets = [64, 0], sizes = [1, 128], strides = [1, 1]} : vector<65x128xf32> to vector<1x128xf32>
    %c0_17 = arith.constant 0 : index
    %c0_18 = arith.constant 0 : index
    %33 = vector.load %arg5[%c0_17, %c0_18] : memref<64x32xf32, #tpu.memory_space<vmem>>, vector<64x32xf32>
    %cst_19 = arith.constant dense<0.000000e+00> : vector<64x128xf32>
    %34 = tpu.matmul %33, %30, %cst_19 {dimension_numbers = #tpu.dot_dimension_numbers<[1], [0], [0], [1], [0, 0, 1, 1], [], []>} : vector<64x32xf32>, vector<32x128xf32>, vector<64x128xf32> -> vector<64x128xf32>
    %35 = vector.broadcast %32 : vector<1x128xf32> to vector<64x128xf32>
    %36 = arith.addf %34, %35 : vector<64x128xf32>
    %c0_20 = arith.constant 0 : index
    %c0_21 = arith.constant 0 : index
    %37 = vector.load %arg6[%c0_20, %c0_21] : memref<64x128xf32, #tpu.memory_space<vmem>>, vector<64x128xf32>
    tpu.vector_store %arg6[%c0_20, %c0_21], %36 {strides = array<i32>} : memref<64x128xf32, #tpu.memory_space<vmem>>, vector<64x128xf32>,
    %c0_22 = arith.constant 0 : index
    %c0_23 = arith.constant 0 : index
    %c0_24 = arith.constant 0 : index
    %c0_25 = arith.constant 0 : index
    %38 = vector.load %arg1[%c0_22, %c0_23, %c0_24, %c0_25] : memref<2x2x8x32xf32, #tpu.memory_space<vmem>>, vector<1x1x8x32xf32>
    %39 = vector.shape_cast %38 : vector<1x1x8x32xf32> to vector<8x32xf32>
    %c1 = arith.constant 1 : index
    %c0_26 = arith.constant 0 : index
    %c0_27 = arith.constant 0 : index
    %c0_28 = arith.constant 0 : index
    %40 = vector.load %arg1[%c1, %c0_26, %c0_27, %c0_28] : memref<2x2x8x32xf32, #tpu.memory_space<vmem>>, vector<1x1x8x32xf32>
    %41 = vector.shape_cast %40 : vector<1x1x8x32xf32> to vector<8x32xf32>
    %c0_i32 = arith.constant 0 : i32
    %c8_i32 = arith.constant 8 : i32
    %42 = arith.muli %c0_i32, %c8_i32 : i32
    %43 = tpu.assume_multiple %42, 8 : i32
    %44 = arith.index_cast %43 : i32 to index
    %c0_29 = arith.constant 0 : index
    %45 = vector.load %arg6[%44, %c0_29] : memref<64x128xf32, #tpu.memory_space<vmem>>, vector<8x128xf32>
    %cst_30 = arith.constant dense<0.000000e+00> : vector<8x128xf32>
    %46 = tpu.matmul %39, %31, %cst_30 {dimension_numbers = #tpu.dot_dimension_numbers<[1], [0], [0], [1], [0, 0, 1, 1], [], []>} : vector<8x32xf32>, vector<32x128xf32>, vector<8x128xf32> -> vector<8x128xf32>
    %47 = arith.addf %45, %46 : vector<8x128xf32>
    %48 = arith.mulf %47, %24 : vector<8x128xf32>
    %49 = math.tanh %48 : vector<8x128xf32>
    %50 = arith.mulf %24, %49 : vector<8x128xf32>
    %51 = arith.addf %50, %27 : vector<8x128xf32>
    %52 = vector.extract_strided_slice %51 {offsets = [0, 0], sizes = [8, 32], strides = [1, 1]} : vector<8x128xf32> to vector<8x32xf32>
    %53 = vector.extract_strided_slice %51 {offsets = [0, 32], sizes = [8, 32], strides = [1, 1]} : vector<8x128xf32> to vector<8x32xf32>
    %54 = vector.extract_strided_slice %51 {offsets = [0, 64], sizes = [8, 32], strides = [1, 1]} : vector<8x128xf32> to vector<8x32xf32>
    %55 = vector.extract_strided_slice %51 {offsets = [0, 96], sizes = [8, 32], strides = [1, 1]} : vector<8x128xf32> to vector<8x32xf32>
    %56 = arith.mulf %53, %41 : vector<8x32xf32>
    %57 = arith.mulf %52, %54 : vector<8x32xf32>
    %58 = arith.addf %56, %57 : vector<8x32xf32>
    %59 = math.tanh %58 : vector<8x32xf32>
    %60 = arith.mulf %55, %59 : vector<8x32xf32>
    %61 = arith.index_cast %43 : i32 to index
    %c0_31 = arith.constant 0 : index
    %62 = vector.load %arg5[%61, %c0_31] : memref<64x32xf32, #tpu.memory_space<vmem>>, vector<8x32xf32>
    tpu.vector_store %arg5[%61, %c0_31], %60 {strides = array<i32>} : memref<64x32xf32, #tpu.memory_space<vmem>>, vector<8x32xf32>,
    %c1_i32 = arith.constant 1 : i32
    %c8_i32_32 = arith.constant 8 : i32
    %63 = arith.muli %c1_i32, %c8_i32_32 : i32
    %64 = tpu.assume_multiple %63, 8 : i32
    %65 = arith.index_cast %64 : i32 to index
    %c0_33 = arith.constant 0 : index
    %66 = vector.load %arg6[%65, %c0_33] : memref<64x128xf32, #tpu.memory_space<vmem>>, vector<8x128xf32>
    %cst_34 = arith.constant dense<0.000000e+00> : vector<8x128xf32>
    %67 = tpu.matmul %60, %31, %cst_34 {dimension_numbers = #tpu.dot_dimension_numbers<[1], [0], [0], [1], [0, 0, 1, 1], [], []>} : vector<8x32xf32>, vector<32x128xf32>, vector<8x128xf32> -> vector<8x128xf32>
    %68 = arith.addf %66, %67 : vector<8x128xf32>
    %69 = arith.mulf %68, %24 : vector<8x128xf32>
    %70 = math.tanh %69 : vector<8x128xf32>
    %71 = arith.mulf %24, %70 : vector<8x128xf32>
    %72 = arith.addf %71, %27 : vector<8x128xf32>
    %73 = vector.extract_strided_slice %72 {offsets = [0, 0], sizes = [8, 32], strides = [1, 1]} : vector<8x128xf32> to vector<8x32xf32>
    %74 = vector.extract_strided_slice %72 {offsets = [0, 32], sizes = [8, 32], strides = [1, 1]} : vector<8x128xf32> to vector<8x32xf32>
    %75 = vector.extract_strided_slice %72 {offsets = [0, 64], sizes = [8, 32], strides = [1, 1]} : vector<8x128xf32> to vector<8x32xf32>
    %76 = vector.extract_strided_slice %72 {offsets = [0, 96], sizes = [8, 32], strides = [1, 1]} : vector<8x128xf32> to vector<8x32xf32>
    %77 = arith.mulf %74, %58 : vector<8x32xf32>
    %78 = arith.mulf %73, %75 : vector<8x32xf32>
    %79 = arith.addf %77, %78 : vector<8x32xf32>
    %80 = math.tanh %79 : vector<8x32xf32>
    %81 = arith.mulf %76, %80 : vector<8x32xf32>
    %82 = arith.index_cast %64 : i32 to index
    %c0_35 = arith.constant 0 : index
    %83 = vector.load %arg5[%82, %c0_35] : memref<64x32xf32, #tpu.memory_space<vmem>>, vector<8x32xf32>
    tpu.vector_store %arg5[%82, %c0_35], %81 {strides = array<i32>} : memref<64x32xf32, #tpu.memory_space<vmem>>, vector<8x32xf32>,
    %c2_i32 = arith.constant 2 : i32
    %c8_i32_36 = arith.constant 8 : i32
    %84 = arith.muli %c2_i32, %c8_i32_36 : i32
    %85 = tpu.assume_multiple %84, 8 : i32
    %86 = arith.index_cast %85 : i32 to index
    %c0_37 = arith.constant 0 : index
    %87 = vector.load %arg6[%86, %c0_37] : memref<64x128xf32, #tpu.memory_space<vmem>>, vector<8x128xf32>
    %cst_38 = arith.constant dense<0.000000e+00> : vector<8x128xf32>
    %88 = tpu.matmul %81, %31, %cst_38 {dimension_numbers = #tpu.dot_dimension_numbers<[1], [0], [0], [1], [0, 0, 1, 1], [], []>} : vector<8x32xf32>, vector<32x128xf32>, vector<8x128xf32> -> vector<8x128xf32>
    %89 = arith.addf %87, %88 : vector<8x128xf32>
    %90 = arith.mulf %89, %24 : vector<8x128xf32>
    %91 = math.tanh %90 : vector<8x128xf32>
    %92 = arith.mulf %24, %91 : vector<8x128xf32>
    %93 = arith.addf %92, %27 : vector<8x128xf32>
    %94 = vector.extract_strided_slice %93 {offsets = [0, 0], sizes = [8, 32], strides = [1, 1]} : vector<8x128xf32> to vector<8x32xf32>
    %95 = vector.extract_strided_slice %93 {offsets = [0, 32], sizes = [8, 32], strides = [1, 1]} : vector<8x128xf32> to vector<8x32xf32>
    %96 = vector.extract_strided_slice %93 {offsets = [0, 64], sizes = [8, 32], strides = [1, 1]} : vector<8x128xf32> to vector<8x32xf32>
    %97 = vector.extract_strided_slice %93 {offsets = [0, 96], sizes = [8, 32], strides = [1, 1]} : vector<8x128xf32> to vector<8x32xf32>
    %98 = arith.mulf %95, %79 : vector<8x32xf32>
    %99 = arith.mulf %94, %96 : vector<8x32xf32>
    %100 = arith.addf %98, %99 : vector<8x32xf32>
    %101 = math.tanh %100 : vector<8x32xf32>
    %102 = arith.mulf %97, %101 : vector<8x32xf32>
    %103 = arith.index_cast %85 : i32 to index
    %c0_39 = arith.constant 0 : index
    %104 = vector.load %arg5[%103, %c0_39] : memref<64x32xf32, #tpu.memory_space<vmem>>, vector<8x32xf32>
    tpu.vector_store %arg5[%103, %c0_39], %102 {strides = array<i32>} : memref<64x32xf32, #tpu.memory_space<vmem>>, vector<8x32xf32>,
    %c3_i32 = arith.constant 3 : i32
    %c8_i32_40 = arith.constant 8 : i32
    %105 = arith.muli %c3_i32, %c8_i32_40 : i32
    %106 = tpu.assume_multiple %105, 8 : i32
    %107 = arith.index_cast %106 : i32 to index
    %c0_41 = arith.constant 0 : index
    %108 = vector.load %arg6[%107, %c0_41] : memref<64x128xf32, #tpu.memory_space<vmem>>, vector<8x128xf32>
    %cst_42 = arith.constant dense<0.000000e+00> : vector<8x128xf32>
    %109 = tpu.matmul %102, %31, %cst_42 {dimension_numbers = #tpu.dot_dimension_numbers<[1], [0], [0], [1], [0, 0, 1, 1], [], []>} : vector<8x32xf32>, vector<32x128xf32>, vector<8x128xf32> -> vector<8x128xf32>
    %110 = arith.addf %108, %109 : vector<8x128xf32>
    %111 = arith.mulf %110, %24 : vector<8x128xf32>
    %112 = math.tanh %111 : vector<8x128xf32>
    %113 = arith.mulf %24, %112 : vector<8x128xf32>
    %114 = arith.addf %113, %27 : vector<8x128xf32>
    %115 = vector.extract_strided_slice %114 {offsets = [0, 0], sizes = [8, 32], strides = [1, 1]} : vector<8x128xf32> to vector<8x32xf32>
    %116 = vector.extract_strided_slice %114 {offsets = [0, 32], sizes = [8, 32], strides = [1, 1]} : vector<8x128xf32> to vector<8x32xf32>
    %117 = vector.extract_strided_slice %114 {offsets = [0, 64], sizes = [8, 32], strides = [1, 1]} : vector<8x128xf32> to vector<8x32xf32>
    %118 = vector.extract_strided_slice %114 {offsets = [0, 96], sizes = [8, 32], strides = [1, 1]} : vector<8x128xf32> to vector<8x32xf32>
    %119 = arith.mulf %116, %100 : vector<8x32xf32>
    %120 = arith.mulf %115, %117 : vector<8x32xf32>
    %121 = arith.addf %119, %120 : vector<8x32xf32>
    %122 = math.tanh %121 : vector<8x32xf32>
    %123 = arith.mulf %118, %122 : vector<8x32xf32>
    %124 = arith.index_cast %106 : i32 to index
    %c0_43 = arith.constant 0 : index
    %125 = vector.load %arg5[%124, %c0_43] : memref<64x32xf32, #tpu.memory_space<vmem>>, vector<8x32xf32>
    tpu.vector_store %arg5[%124, %c0_43], %123 {strides = array<i32>} : memref<64x32xf32, #tpu.memory_space<vmem>>, vector<8x32xf32>,
    %c4_i32 = arith.constant 4 : i32
    %c8_i32_44 = arith.constant 8 : i32
    %126 = arith.muli %c4_i32, %c8_i32_44 : i32
    %127 = tpu.assume_multiple %126, 8 : i32
    %128 = arith.index_cast %127 : i32 to index
    %c0_45 = arith.constant 0 : index
    %129 = vector.load %arg6[%128, %c0_45] : memref<64x128xf32, #tpu.memory_space<vmem>>, vector<8x128xf32>
    %cst_46 = arith.constant dense<0.000000e+00> : vector<8x128xf32>
    %130 = tpu.matmul %123, %31, %cst_46 {dimension_numbers = #tpu.dot_dimension_numbers<[1], [0], [0], [1], [0, 0, 1, 1], [], []>} : vector<8x32xf32>, vector<32x128xf32>, vector<8x128xf32> -> vector<8x128xf32>
    %131 = arith.addf %129, %130 : vector<8x128xf32>
    %132 = arith.mulf %131, %24 : vector<8x128xf32>
    %133 = math.tanh %132 : vector<8x128xf32>
    %134 = arith.mulf %24, %133 : vector<8x128xf32>
    %135 = arith.addf %134, %27 : vector<8x128xf32>
    %136 = vector.extract_strided_slice %135 {offsets = [0, 0], sizes = [8, 32], strides = [1, 1]} : vector<8x128xf32> to vector<8x32xf32>
    %137 = vector.extract_strided_slice %135 {offsets = [0, 32], sizes = [8, 32], strides = [1, 1]} : vector<8x128xf32> to vector<8x32xf32>
    %138 = vector.extract_strided_slice %135 {offsets = [0, 64], sizes = [8, 32], strides = [1, 1]} : vector<8x128xf32> to vector<8x32xf32>
    %139 = vector.extract_strided_slice %135 {offsets = [0, 96], sizes = [8, 32], strides = [1, 1]} : vector<8x128xf32> to vector<8x32xf32>
    %140 = arith.mulf %137, %121 : vector<8x32xf32>
    %141 = arith.mulf %136, %138 : vector<8x32xf32>
    %142 = arith.addf %140, %141 : vector<8x32xf32>
    %143 = math.tanh %142 : vector<8x32xf32>
    %144 = arith.mulf %139, %143 : vector<8x32xf32>
    %145 = arith.index_cast %127 : i32 to index
    %c0_47 = arith.constant 0 : index
    %146 = vector.load %arg5[%145, %c0_47] : memref<64x32xf32, #tpu.memory_space<vmem>>, vector<8x32xf32>
    tpu.vector_store %arg5[%145, %c0_47], %144 {strides = array<i32>} : memref<64x32xf32, #tpu.memory_space<vmem>>, vector<8x32xf32>,
    %c5_i32 = arith.constant 5 : i32
    %c8_i32_48 = arith.constant 8 : i32
    %147 = arith.muli %c5_i32, %c8_i32_48 : i32
    %148 = tpu.assume_multiple %147, 8 : i32
    %149 = arith.index_cast %148 : i32 to index
    %c0_49 = arith.constant 0 : index
    %150 = vector.load %arg6[%149, %c0_49] : memref<64x128xf32, #tpu.memory_space<vmem>>, vector<8x128xf32>
    %cst_50 = arith.constant dense<0.000000e+00> : vector<8x128xf32>
    %151 = tpu.matmul %144, %31, %cst_50 {dimension_numbers = #tpu.dot_dimension_numbers<[1], [0], [0], [1], [0, 0, 1, 1], [], []>} : vector<8x32xf32>, vector<32x128xf32>, vector<8x128xf32> -> vector<8x128xf32>
    %152 = arith.addf %150, %151 : vector<8x128xf32>
    %153 = arith.mulf %152, %24 : vector<8x128xf32>
    %154 = math.tanh %153 : vector<8x128xf32>
    %155 = arith.mulf %24, %154 : vector<8x128xf32>
    %156 = arith.addf %155, %27 : vector<8x128xf32>
    %157 = vector.extract_strided_slice %156 {offsets = [0, 0], sizes = [8, 32], strides = [1, 1]} : vector<8x128xf32> to vector<8x32xf32>
    %158 = vector.extract_strided_slice %156 {offsets = [0, 32], sizes = [8, 32], strides = [1, 1]} : vector<8x128xf32> to vector<8x32xf32>
    %159 = vector.extract_strided_slice %156 {offsets = [0, 64], sizes = [8, 32], strides = [1, 1]} : vector<8x128xf32> to vector<8x32xf32>
    %160 = vector.extract_strided_slice %156 {offsets = [0, 96], sizes = [8, 32], strides = [1, 1]} : vector<8x128xf32> to vector<8x32xf32>
    %161 = arith.mulf %158, %142 : vector<8x32xf32>
    %162 = arith.mulf %157, %159 : vector<8x32xf32>
    %163 = arith.addf %161, %162 : vector<8x32xf32>
    %164 = math.tanh %163 : vector<8x32xf32>
    %165 = arith.mulf %160, %164 : vector<8x32xf32>
    %166 = arith.index_cast %148 : i32 to index
    %c0_51 = arith.constant 0 : index
    %167 = vector.load %arg5[%166, %c0_51] : memref<64x32xf32, #tpu.memory_space<vmem>>, vector<8x32xf32>
    tpu.vector_store %arg5[%166, %c0_51], %165 {strides = array<i32>} : memref<64x32xf32, #tpu.memory_space<vmem>>, vector<8x32xf32>,
    %c6_i32 = arith.constant 6 : i32
    %c8_i32_52 = arith.constant 8 : i32
    %168 = arith.muli %c6_i32, %c8_i32_52 : i32
    %169 = tpu.assume_multiple %168, 8 : i32
    %170 = arith.index_cast %169 : i32 to index
    %c0_53 = arith.constant 0 : index
    %171 = vector.load %arg6[%170, %c0_53] : memref<64x128xf32, #tpu.memory_space<vmem>>, vector<8x128xf32>
    %cst_54 = arith.constant dense<0.000000e+00> : vector<8x128xf32>
    %172 = tpu.matmul %165, %31, %cst_54 {dimension_numbers = #tpu.dot_dimension_numbers<[1], [0], [0], [1], [0, 0, 1, 1], [], []>} : vector<8x32xf32>, vector<32x128xf32>, vector<8x128xf32> -> vector<8x128xf32>
    %173 = arith.addf %171, %172 : vector<8x128xf32>
    %174 = arith.mulf %173, %24 : vector<8x128xf32>
    %175 = math.tanh %174 : vector<8x128xf32>
    %176 = arith.mulf %24, %175 : vector<8x128xf32>
    %177 = arith.addf %176, %27 : vector<8x128xf32>
    %178 = vector.extract_strided_slice %177 {offsets = [0, 0], sizes = [8, 32], strides = [1, 1]} : vector<8x128xf32> to vector<8x32xf32>
    %179 = vector.extract_strided_slice %177 {offsets = [0, 32], sizes = [8, 32], strides = [1, 1]} : vector<8x128xf32> to vector<8x32xf32>
    %180 = vector.extract_strided_slice %177 {offsets = [0, 64], sizes = [8, 32], strides = [1, 1]} : vector<8x128xf32> to vector<8x32xf32>
    %181 = vector.extract_strided_slice %177 {offsets = [0, 96], sizes = [8, 32], strides = [1, 1]} : vector<8x128xf32> to vector<8x32xf32>
    %182 = arith.mulf %179, %163 : vector<8x32xf32>
    %183 = arith.mulf %178, %180 : vector<8x32xf32>
    %184 = arith.addf %182, %183 : vector<8x32xf32>
    %185 = math.tanh %184 : vector<8x32xf32>
    %186 = arith.mulf %181, %185 : vector<8x32xf32>
    %187 = arith.index_cast %169 : i32 to index
    %c0_55 = arith.constant 0 : index
    %188 = vector.load %arg5[%187, %c0_55] : memref<64x32xf32, #tpu.memory_space<vmem>>, vector<8x32xf32>
    tpu.vector_store %arg5[%187, %c0_55], %186 {strides = array<i32>} : memref<64x32xf32, #tpu.memory_space<vmem>>, vector<8x32xf32>,
    %c7_i32 = arith.constant 7 : i32
    %c8_i32_56 = arith.constant 8 : i32
    %189 = arith.muli %c7_i32, %c8_i32_56 : i32
    %190 = tpu.assume_multiple %189, 8 : i32
    %191 = arith.index_cast %190 : i32 to index
    %c0_57 = arith.constant 0 : index
    %192 = vector.load %arg6[%191, %c0_57] : memref<64x128xf32, #tpu.memory_space<vmem>>, vector<8x128xf32>
    %cst_58 = arith.constant dense<0.000000e+00> : vector<8x128xf32>
    %193 = tpu.matmul %186, %31, %cst_58 {dimension_numbers = #tpu.dot_dimension_numbers<[1], [0], [0], [1], [0, 0, 1, 1], [], []>} : vector<8x32xf32>, vector<32x128xf32>, vector<8x128xf32> -> vector<8x128xf32>
    %194 = arith.addf %192, %193 : vector<8x128xf32>
    %195 = arith.mulf %194, %24 : vector<8x128xf32>
    %196 = math.tanh %195 : vector<8x128xf32>
    %197 = arith.mulf %24, %196 : vector<8x128xf32>
    %198 = arith.addf %197, %27 : vector<8x128xf32>
    %199 = vector.extract_strided_slice %198 {offsets = [0, 0], sizes = [8, 32], strides = [1, 1]} : vector<8x128xf32> to vector<8x32xf32>
    %200 = vector.extract_strided_slice %198 {offsets = [0, 32], sizes = [8, 32], strides = [1, 1]} : vector<8x128xf32> to vector<8x32xf32>
    %201 = vector.extract_strided_slice %198 {offsets = [0, 64], sizes = [8, 32], strides = [1, 1]} : vector<8x128xf32> to vector<8x32xf32>
    %202 = vector.extract_strided_slice %198 {offsets = [0, 96], sizes = [8, 32], strides = [1, 1]} : vector<8x128xf32> to vector<8x32xf32>
    %203 = arith.mulf %200, %184 : vector<8x32xf32>
    %204 = arith.mulf %199, %201 : vector<8x32xf32>
    %205 = arith.addf %203, %204 : vector<8x32xf32>
    %206 = math.tanh %205 : vector<8x32xf32>
    %207 = arith.mulf %202, %206 : vector<8x32xf32>
    %208 = arith.index_cast %190 : i32 to index
    %c0_59 = arith.constant 0 : index
    %209 = vector.load %arg5[%208, %c0_59] : memref<64x32xf32, #tpu.memory_space<vmem>>, vector<8x32xf32>
    tpu.vector_store %arg5[%208, %c0_59], %207 {strides = array<i32>} : memref<64x32xf32, #tpu.memory_space<vmem>>, vector<8x32xf32>,
    %c8_i32_60 = arith.constant 8 : i32
    %c1_61 = arith.constant 1 : index
    %c0_62 = arith.constant 0 : index
    %c0_63 = arith.constant 0 : index
    %210 = vector.load %arg3[%c1_61, %c0_62, %c0_63] : memref<2x65x128xf32, #tpu.memory_space<vmem>>, vector<1x65x128xf32>
    %211 = vector.shape_cast %210 : vector<1x65x128xf32> to vector<65x128xf32>
    %212 = vector.extract_strided_slice %211 {offsets = [0, 0], sizes = [32, 128], strides = [1, 1]} : vector<65x128xf32> to vector<32x128xf32>
    %213 = vector.extract_strided_slice %211 {offsets = [32, 0], sizes = [32, 128], strides = [1, 1]} : vector<65x128xf32> to vector<32x128xf32>
    %214 = vector.extract_strided_slice %211 {offsets = [64, 0], sizes = [1, 128], strides = [1, 1]} : vector<65x128xf32> to vector<1x128xf32>
    %c0_64 = arith.constant 0 : index
    %c0_65 = arith.constant 0 : index
    %215 = vector.load %arg5[%c0_64, %c0_65] : memref<64x32xf32, #tpu.memory_space<vmem>>, vector<64x32xf32>
    %cst_66 = arith.constant dense<0.000000e+00> : vector<64x128xf32>
    %216 = tpu.matmul %215, %212, %cst_66 {dimension_numbers = #tpu.dot_dimension_numbers<[1], [0], [0], [1], [0, 0, 1, 1], [], []>} : vector<64x32xf32>, vector<32x128xf32>, vector<64x128xf32> -> vector<64x128xf32>
    %217 = vector.broadcast %214 : vector<1x128xf32> to vector<64x128xf32>
    %218 = arith.addf %216, %217 : vector<64x128xf32>
    %c0_67 = arith.constant 0 : index
    %c0_68 = arith.constant 0 : index
    %219 = vector.load %arg6[%c0_67, %c0_68] : memref<64x128xf32, #tpu.memory_space<vmem>>, vector<64x128xf32>
    tpu.vector_store %arg6[%c0_67, %c0_68], %218 {strides = array<i32>} : memref<64x128xf32, #tpu.memory_space<vmem>>, vector<64x128xf32>,
    %c0_69 = arith.constant 0 : index
    %c1_70 = arith.constant 1 : index
    %c0_71 = arith.constant 0 : index
    %c0_72 = arith.constant 0 : index
    %220 = vector.load %arg1[%c0_69, %c1_70, %c0_71, %c0_72] : memref<2x2x8x32xf32, #tpu.memory_space<vmem>>, vector<1x1x8x32xf32>
    %221 = vector.shape_cast %220 : vector<1x1x8x32xf32> to vector<8x32xf32>
    %c1_73 = arith.constant 1 : index
    %c1_74 = arith.constant 1 : index
    %c0_75 = arith.constant 0 : index
    %c0_76 = arith.constant 0 : index
    %222 = vector.load %arg1[%c1_73, %c1_74, %c0_75, %c0_76] : memref<2x2x8x32xf32, #tpu.memory_space<vmem>>, vector<1x1x8x32xf32>
    %223 = vector.shape_cast %222 : vector<1x1x8x32xf32> to vector<8x32xf32>
    %c0_i32_77 = arith.constant 0 : i32
    %c8_i32_78 = arith.constant 8 : i32
    %224 = arith.muli %c0_i32_77, %c8_i32_78 : i32
    %225 = tpu.assume_multiple %224, 8 : i32
    %226 = arith.index_cast %225 : i32 to index
    %c0_79 = arith.constant 0 : index
    %227 = vector.load %arg6[%226, %c0_79] : memref<64x128xf32, #tpu.memory_space<vmem>>, vector<8x128xf32>
    %cst_80 = arith.constant dense<0.000000e+00> : vector<8x128xf32>
    %228 = tpu.matmul %221, %213, %cst_80 {dimension_numbers = #tpu.dot_dimension_numbers<[1], [0], [0], [1], [0, 0, 1, 1], [], []>} : vector<8x32xf32>, vector<32x128xf32>, vector<8x128xf32> -> vector<8x128xf32>
    %229 = arith.addf %227, %228 : vector<8x128xf32>
    %230 = arith.mulf %229, %24 : vector<8x128xf32>
    %231 = math.tanh %230 : vector<8x128xf32>
    %232 = arith.mulf %24, %231 : vector<8x128xf32>
    %233 = arith.addf %232, %27 : vector<8x128xf32>
    %234 = vector.extract_strided_slice %233 {offsets = [0, 0], sizes = [8, 32], strides = [1, 1]} : vector<8x128xf32> to vector<8x32xf32>
    %235 = vector.extract_strided_slice %233 {offsets = [0, 32], sizes = [8, 32], strides = [1, 1]} : vector<8x128xf32> to vector<8x32xf32>
    %236 = vector.extract_strided_slice %233 {offsets = [0, 64], sizes = [8, 32], strides = [1, 1]} : vector<8x128xf32> to vector<8x32xf32>
    %237 = vector.extract_strided_slice %233 {offsets = [0, 96], sizes = [8, 32], strides = [1, 1]} : vector<8x128xf32> to vector<8x32xf32>
    %238 = arith.mulf %235, %223 : vector<8x32xf32>
    %239 = arith.mulf %234, %236 : vector<8x32xf32>
    %240 = arith.addf %238, %239 : vector<8x32xf32>
    %241 = math.tanh %240 : vector<8x32xf32>
    %242 = arith.mulf %237, %241 : vector<8x32xf32>
    %243 = arith.index_cast %225 : i32 to index
    %c0_81 = arith.constant 0 : index
    %244 = vector.load %arg5[%243, %c0_81] : memref<64x32xf32, #tpu.memory_space<vmem>>, vector<8x32xf32>
    tpu.vector_store %arg5[%243, %c0_81], %242 {strides = array<i32>} : memref<64x32xf32, #tpu.memory_space<vmem>>, vector<8x32xf32>,
    %c1_i32_82 = arith.constant 1 : i32
    %c8_i32_83 = arith.constant 8 : i32
    %245 = arith.muli %c1_i32_82, %c8_i32_83 : i32
    %246 = tpu.assume_multiple %245, 8 : i32
    %247 = arith.index_cast %246 : i32 to index
    %c0_84 = arith.constant 0 : index
    %248 = vector.load %arg6[%247, %c0_84] : memref<64x128xf32, #tpu.memory_space<vmem>>, vector<8x128xf32>
    %cst_85 = arith.constant dense<0.000000e+00> : vector<8x128xf32>
    %249 = tpu.matmul %242, %213, %cst_85 {dimension_numbers = #tpu.dot_dimension_numbers<[1], [0], [0], [1], [0, 0, 1, 1], [], []>} : vector<8x32xf32>, vector<32x128xf32>, vector<8x128xf32> -> vector<8x128xf32>
    %250 = arith.addf %248, %249 : vector<8x128xf32>
    %251 = arith.mulf %250, %24 : vector<8x128xf32>
    %252 = math.tanh %251 : vector<8x128xf32>
    %253 = arith.mulf %24, %252 : vector<8x128xf32>
    %254 = arith.addf %253, %27 : vector<8x128xf32>
    %255 = vector.extract_strided_slice %254 {offsets = [0, 0], sizes = [8, 32], strides = [1, 1]} : vector<8x128xf32> to vector<8x32xf32>
    %256 = vector.extract_strided_slice %254 {offsets = [0, 32], sizes = [8, 32], strides = [1, 1]} : vector<8x128xf32> to vector<8x32xf32>
    %257 = vector.extract_strided_slice %254 {offsets = [0, 64], sizes = [8, 32], strides = [1, 1]} : vector<8x128xf32> to vector<8x32xf32>
    %258 = vector.extract_strided_slice %254 {offsets = [0, 96], sizes = [8, 32], strides = [1, 1]} : vector<8x128xf32> to vector<8x32xf32>
    %259 = arith.mulf %256, %240 : vector<8x32xf32>
    %260 = arith.mulf %255, %257 : vector<8x32xf32>
    %261 = arith.addf %259, %260 : vector<8x32xf32>
    %262 = math.tanh %261 : vector<8x32xf32>
    %263 = arith.mulf %258, %262 : vector<8x32xf32>
    %264 = arith.index_cast %246 : i32 to index
    %c0_86 = arith.constant 0 : index
    %265 = vector.load %arg5[%264, %c0_86] : memref<64x32xf32, #tpu.memory_space<vmem>>, vector<8x32xf32>
    tpu.vector_store %arg5[%264, %c0_86], %263 {strides = array<i32>} : memref<64x32xf32, #tpu.memory_space<vmem>>, vector<8x32xf32>,
    %c2_i32_87 = arith.constant 2 : i32
    %c8_i32_88 = arith.constant 8 : i32
    %266 = arith.muli %c2_i32_87, %c8_i32_88 : i32
    %267 = tpu.assume_multiple %266, 8 : i32
    %268 = arith.index_cast %267 : i32 to index
    %c0_89 = arith.constant 0 : index
    %269 = vector.load %arg6[%268, %c0_89] : memref<64x128xf32, #tpu.memory_space<vmem>>, vector<8x128xf32>
    %cst_90 = arith.constant dense<0.000000e+00> : vector<8x128xf32>
    %270 = tpu.matmul %263, %213, %cst_90 {dimension_numbers = #tpu.dot_dimension_numbers<[1], [0], [0], [1], [0, 0, 1, 1], [], []>} : vector<8x32xf32>, vector<32x128xf32>, vector<8x128xf32> -> vector<8x128xf32>
    %271 = arith.addf %269, %270 : vector<8x128xf32>
    %272 = arith.mulf %271, %24 : vector<8x128xf32>
    %273 = math.tanh %272 : vector<8x128xf32>
    %274 = arith.mulf %24, %273 : vector<8x128xf32>
    %275 = arith.addf %274, %27 : vector<8x128xf32>
    %276 = vector.extract_strided_slice %275 {offsets = [0, 0], sizes = [8, 32], strides = [1, 1]} : vector<8x128xf32> to vector<8x32xf32>
    %277 = vector.extract_strided_slice %275 {offsets = [0, 32], sizes = [8, 32], strides = [1, 1]} : vector<8x128xf32> to vector<8x32xf32>
    %278 = vector.extract_strided_slice %275 {offsets = [0, 64], sizes = [8, 32], strides = [1, 1]} : vector<8x128xf32> to vector<8x32xf32>
    %279 = vector.extract_strided_slice %275 {offsets = [0, 96], sizes = [8, 32], strides = [1, 1]} : vector<8x128xf32> to vector<8x32xf32>
    %280 = arith.mulf %277, %261 : vector<8x32xf32>
    %281 = arith.mulf %276, %278 : vector<8x32xf32>
    %282 = arith.addf %280, %281 : vector<8x32xf32>
    %283 = math.tanh %282 : vector<8x32xf32>
    %284 = arith.mulf %279, %283 : vector<8x32xf32>
    %285 = arith.index_cast %267 : i32 to index
    %c0_91 = arith.constant 0 : index
    %286 = vector.load %arg5[%285, %c0_91] : memref<64x32xf32, #tpu.memory_space<vmem>>, vector<8x32xf32>
    tpu.vector_store %arg5[%285, %c0_91], %284 {strides = array<i32>} : memref<64x32xf32, #tpu.memory_space<vmem>>, vector<8x32xf32>,
    %c3_i32_92 = arith.constant 3 : i32
    %c8_i32_93 = arith.constant 8 : i32
    %287 = arith.muli %c3_i32_92, %c8_i32_93 : i32
    %288 = tpu.assume_multiple %287, 8 : i32
    %289 = arith.index_cast %288 : i32 to index
    %c0_94 = arith.constant 0 : index
    %290 = vector.load %arg6[%289, %c0_94] : memref<64x128xf32, #tpu.memory_space<vmem>>, vector<8x128xf32>
    %cst_95 = arith.constant dense<0.000000e+00> : vector<8x128xf32>
    %291 = tpu.matmul %284, %213, %cst_95 {dimension_numbers = #tpu.dot_dimension_numbers<[1], [0], [0], [1], [0, 0, 1, 1], [], []>} : vector<8x32xf32>, vector<32x128xf32>, vector<8x128xf32> -> vector<8x128xf32>
    %292 = arith.addf %290, %291 : vector<8x128xf32>
    %293 = arith.mulf %292, %24 : vector<8x128xf32>
    %294 = math.tanh %293 : vector<8x128xf32>
    %295 = arith.mulf %24, %294 : vector<8x128xf32>
    %296 = arith.addf %295, %27 : vector<8x128xf32>
    %297 = vector.extract_strided_slice %296 {offsets = [0, 0], sizes = [8, 32], strides = [1, 1]} : vector<8x128xf32> to vector<8x32xf32>
    %298 = vector.extract_strided_slice %296 {offsets = [0, 32], sizes = [8, 32], strides = [1, 1]} : vector<8x128xf32> to vector<8x32xf32>
    %299 = vector.extract_strided_slice %296 {offsets = [0, 64], sizes = [8, 32], strides = [1, 1]} : vector<8x128xf32> to vector<8x32xf32>
    %300 = vector.extract_strided_slice %296 {offsets = [0, 96], sizes = [8, 32], strides = [1, 1]} : vector<8x128xf32> to vector<8x32xf32>
    %301 = arith.mulf %298, %282 : vector<8x32xf32>
    %302 = arith.mulf %297, %299 : vector<8x32xf32>
    %303 = arith.addf %301, %302 : vector<8x32xf32>
    %304 = math.tanh %303 : vector<8x32xf32>
    %305 = arith.mulf %300, %304 : vector<8x32xf32>
    %306 = arith.index_cast %288 : i32 to index
    %c0_96 = arith.constant 0 : index
    %307 = vector.load %arg5[%306, %c0_96] : memref<64x32xf32, #tpu.memory_space<vmem>>, vector<8x32xf32>
    tpu.vector_store %arg5[%306, %c0_96], %305 {strides = array<i32>} : memref<64x32xf32, #tpu.memory_space<vmem>>, vector<8x32xf32>,
    %c4_i32_97 = arith.constant 4 : i32
    %c8_i32_98 = arith.constant 8 : i32
    %308 = arith.muli %c4_i32_97, %c8_i32_98 : i32
    %309 = tpu.assume_multiple %308, 8 : i32
    %310 = arith.index_cast %309 : i32 to index
    %c0_99 = arith.constant 0 : index
    %311 = vector.load %arg6[%310, %c0_99] : memref<64x128xf32, #tpu.memory_space<vmem>>, vector<8x128xf32>
    %cst_100 = arith.constant dense<0.000000e+00> : vector<8x128xf32>
    %312 = tpu.matmul %305, %213, %cst_100 {dimension_numbers = #tpu.dot_dimension_numbers<[1], [0], [0], [1], [0, 0, 1, 1], [], []>} : vector<8x32xf32>, vector<32x128xf32>, vector<8x128xf32> -> vector<8x128xf32>
    %313 = arith.addf %311, %312 : vector<8x128xf32>
    %314 = arith.mulf %313, %24 : vector<8x128xf32>
    %315 = math.tanh %314 : vector<8x128xf32>
    %316 = arith.mulf %24, %315 : vector<8x128xf32>
    %317 = arith.addf %316, %27 : vector<8x128xf32>
    %318 = vector.extract_strided_slice %317 {offsets = [0, 0], sizes = [8, 32], strides = [1, 1]} : vector<8x128xf32> to vector<8x32xf32>
    %319 = vector.extract_strided_slice %317 {offsets = [0, 32], sizes = [8, 32], strides = [1, 1]} : vector<8x128xf32> to vector<8x32xf32>
    %320 = vector.extract_strided_slice %317 {offsets = [0, 64], sizes = [8, 32], strides = [1, 1]} : vector<8x128xf32> to vector<8x32xf32>
    %321 = vector.extract_strided_slice %317 {offsets = [0, 96], sizes = [8, 32], strides = [1, 1]} : vector<8x128xf32> to vector<8x32xf32>
    %322 = arith.mulf %319, %303 : vector<8x32xf32>
    %323 = arith.mulf %318, %320 : vector<8x32xf32>
    %324 = arith.addf %322, %323 : vector<8x32xf32>
    %325 = math.tanh %324 : vector<8x32xf32>
    %326 = arith.mulf %321, %325 : vector<8x32xf32>
    %327 = arith.index_cast %309 : i32 to index
    %c0_101 = arith.constant 0 : index
    %328 = vector.load %arg5[%327, %c0_101] : memref<64x32xf32, #tpu.memory_space<vmem>>, vector<8x32xf32>
    tpu.vector_store %arg5[%327, %c0_101], %326 {strides = array<i32>} : memref<64x32xf32, #tpu.memory_space<vmem>>, vector<8x32xf32>,
    %c5_i32_102 = arith.constant 5 : i32
    %c8_i32_103 = arith.constant 8 : i32
    %329 = arith.muli %c5_i32_102, %c8_i32_103 : i32
    %330 = tpu.assume_multiple %329, 8 : i32
    %331 = arith.index_cast %330 : i32 to index
    %c0_104 = arith.constant 0 : index
    %332 = vector.load %arg6[%331, %c0_104] : memref<64x128xf32, #tpu.memory_space<vmem>>, vector<8x128xf32>
    %cst_105 = arith.constant dense<0.000000e+00> : vector<8x128xf32>
    %333 = tpu.matmul %326, %213, %cst_105 {dimension_numbers = #tpu.dot_dimension_numbers<[1], [0], [0], [1], [0, 0, 1, 1], [], []>} : vector<8x32xf32>, vector<32x128xf32>, vector<8x128xf32> -> vector<8x128xf32>
    %334 = arith.addf %332, %333 : vector<8x128xf32>
    %335 = arith.mulf %334, %24 : vector<8x128xf32>
    %336 = math.tanh %335 : vector<8x128xf32>
    %337 = arith.mulf %24, %336 : vector<8x128xf32>
    %338 = arith.addf %337, %27 : vector<8x128xf32>
    %339 = vector.extract_strided_slice %338 {offsets = [0, 0], sizes = [8, 32], strides = [1, 1]} : vector<8x128xf32> to vector<8x32xf32>
    %340 = vector.extract_strided_slice %338 {offsets = [0, 32], sizes = [8, 32], strides = [1, 1]} : vector<8x128xf32> to vector<8x32xf32>
    %341 = vector.extract_strided_slice %338 {offsets = [0, 64], sizes = [8, 32], strides = [1, 1]} : vector<8x128xf32> to vector<8x32xf32>
    %342 = vector.extract_strided_slice %338 {offsets = [0, 96], sizes = [8, 32], strides = [1, 1]} : vector<8x128xf32> to vector<8x32xf32>
    %343 = arith.mulf %340, %324 : vector<8x32xf32>
    %344 = arith.mulf %339, %341 : vector<8x32xf32>
    %345 = arith.addf %343, %344 : vector<8x32xf32>
    %346 = math.tanh %345 : vector<8x32xf32>
    %347 = arith.mulf %342, %346 : vector<8x32xf32>
    %348 = arith.index_cast %330 : i32 to index
    %c0_106 = arith.constant 0 : index
    %349 = vector.load %arg5[%348, %c0_106] : memref<64x32xf32, #tpu.memory_space<vmem>>, vector<8x32xf32>
    tpu.vector_store %arg5[%348, %c0_106], %347 {strides = array<i32>} : memref<64x32xf32, #tpu.memory_space<vmem>>, vector<8x32xf32>,
    %c6_i32_107 = arith.constant 6 : i32
    %c8_i32_108 = arith.constant 8 : i32
    %350 = arith.muli %c6_i32_107, %c8_i32_108 : i32
    %351 = tpu.assume_multiple %350, 8 : i32
    %352 = arith.index_cast %351 : i32 to index
    %c0_109 = arith.constant 0 : index
    %353 = vector.load %arg6[%352, %c0_109] : memref<64x128xf32, #tpu.memory_space<vmem>>, vector<8x128xf32>
    %cst_110 = arith.constant dense<0.000000e+00> : vector<8x128xf32>
    %354 = tpu.matmul %347, %213, %cst_110 {dimension_numbers = #tpu.dot_dimension_numbers<[1], [0], [0], [1], [0, 0, 1, 1], [], []>} : vector<8x32xf32>, vector<32x128xf32>, vector<8x128xf32> -> vector<8x128xf32>
    %355 = arith.addf %353, %354 : vector<8x128xf32>
    %356 = arith.mulf %355, %24 : vector<8x128xf32>
    %357 = math.tanh %356 : vector<8x128xf32>
    %358 = arith.mulf %24, %357 : vector<8x128xf32>
    %359 = arith.addf %358, %27 : vector<8x128xf32>
    %360 = vector.extract_strided_slice %359 {offsets = [0, 0], sizes = [8, 32], strides = [1, 1]} : vector<8x128xf32> to vector<8x32xf32>
    %361 = vector.extract_strided_slice %359 {offsets = [0, 32], sizes = [8, 32], strides = [1, 1]} : vector<8x128xf32> to vector<8x32xf32>
    %362 = vector.extract_strided_slice %359 {offsets = [0, 64], sizes = [8, 32], strides = [1, 1]} : vector<8x128xf32> to vector<8x32xf32>
    %363 = vector.extract_strided_slice %359 {offsets = [0, 96], sizes = [8, 32], strides = [1, 1]} : vector<8x128xf32> to vector<8x32xf32>
    %364 = arith.mulf %361, %345 : vector<8x32xf32>
    %365 = arith.mulf %360, %362 : vector<8x32xf32>
    %366 = arith.addf %364, %365 : vector<8x32xf32>
    %367 = math.tanh %366 : vector<8x32xf32>
    %368 = arith.mulf %363, %367 : vector<8x32xf32>
    %369 = arith.index_cast %351 : i32 to index
    %c0_111 = arith.constant 0 : index
    %370 = vector.load %arg5[%369, %c0_111] : memref<64x32xf32, #tpu.memory_space<vmem>>, vector<8x32xf32>
    tpu.vector_store %arg5[%369, %c0_111], %368 {strides = array<i32>} : memref<64x32xf32, #tpu.memory_space<vmem>>, vector<8x32xf32>,
    %c7_i32_112 = arith.constant 7 : i32
    %c8_i32_113 = arith.constant 8 : i32
    %371 = arith.muli %c7_i32_112, %c8_i32_113 : i32
    %372 = tpu.assume_multiple %371, 8 : i32
    %373 = arith.index_cast %372 : i32 to index
    %c0_114 = arith.constant 0 : index
    %374 = vector.load %arg6[%373, %c0_114] : memref<64x128xf32, #tpu.memory_space<vmem>>, vector<8x128xf32>
    %cst_115 = arith.constant dense<0.000000e+00> : vector<8x128xf32>
    %375 = tpu.matmul %368, %213, %cst_115 {dimension_numbers = #tpu.dot_dimension_numbers<[1], [0], [0], [1], [0, 0, 1, 1], [], []>} : vector<8x32xf32>, vector<32x128xf32>, vector<8x128xf32> -> vector<8x128xf32>
    %376 = arith.addf %374, %375 : vector<8x128xf32>
    %377 = arith.mulf %376, %24 : vector<8x128xf32>
    %378 = math.tanh %377 : vector<8x128xf32>
    %379 = arith.mulf %24, %378 : vector<8x128xf32>
    %380 = arith.addf %379, %27 : vector<8x128xf32>
    %381 = vector.extract_strided_slice %380 {offsets = [0, 0], sizes = [8, 32], strides = [1, 1]} : vector<8x128xf32> to vector<8x32xf32>
    %382 = vector.extract_strided_slice %380 {offsets = [0, 32], sizes = [8, 32], strides = [1, 1]} : vector<8x128xf32> to vector<8x32xf32>
    %383 = vector.extract_strided_slice %380 {offsets = [0, 64], sizes = [8, 32], strides = [1, 1]} : vector<8x128xf32> to vector<8x32xf32>
    %384 = vector.extract_strided_slice %380 {offsets = [0, 96], sizes = [8, 32], strides = [1, 1]} : vector<8x128xf32> to vector<8x32xf32>
    %385 = arith.mulf %382, %366 : vector<8x32xf32>
    %386 = arith.mulf %381, %383 : vector<8x32xf32>
    %387 = arith.addf %385, %386 : vector<8x32xf32>
    %388 = math.tanh %387 : vector<8x32xf32>
    %389 = arith.mulf %384, %388 : vector<8x32xf32>
    %390 = arith.index_cast %372 : i32 to index
    %c0_116 = arith.constant 0 : index
    %391 = vector.load %arg5[%390, %c0_116] : memref<64x32xf32, #tpu.memory_space<vmem>>, vector<8x32xf32>
    tpu.vector_store %arg5[%390, %c0_116], %389 {strides = array<i32>} : memref<64x32xf32, #tpu.memory_space<vmem>>, vector<8x32xf32>,
    %c8_i32_117 = arith.constant 8 : i32
    %c56 = arith.constant 56 : index
    %c0_118 = arith.constant 0 : index
    %392 = vector.load %arg2[%c56, %c0_118] : memref<136x128xf32, #tpu.memory_space<vmem>>, vector<32x128xf32>
    %393 = vector.extract_strided_slice %392 {offsets = [0, 0], sizes = [32, 32], strides = [1, 1]} : vector<32x128xf32> to vector<32x32xf32>
    %c88 = arith.constant 88 : index
    %c0_119 = arith.constant 0 : index
    %394 = vector.load %arg2[%c88, %c0_119] : memref<136x128xf32, #tpu.memory_space<vmem>>, vector<1x128xf32>
    %395 = vector.extract_strided_slice %394 {offsets = [0, 0], sizes = [1, 32], strides = [1, 1]} : vector<1x128xf32> to vector<1x32xf32>
    %c96 = arith.constant 96 : index
    %c0_120 = arith.constant 0 : index
    %396 = vector.load %arg2[%c96, %c0_120] : memref<136x128xf32, #tpu.memory_space<vmem>>, vector<32x128xf32>
    %c128 = arith.constant 128 : index
    %c0_121 = arith.constant 0 : index
    %397 = vector.load %arg2[%c128, %c0_121] : memref<136x128xf32, #tpu.memory_space<vmem>>, vector<1x128xf32>
    %c0_122 = arith.constant 0 : index
    %c0_123 = arith.constant 0 : index
    %398 = vector.load %arg5[%c0_122, %c0_123] : memref<64x32xf32, #tpu.memory_space<vmem>>, vector<64x32xf32>
    %cst_124 = arith.constant dense<0.000000e+00> : vector<64x32xf32>
    %399 = tpu.matmul %398, %393, %cst_124 {dimension_numbers = #tpu.dot_dimension_numbers<[1], [0], [0], [1], [0, 0, 1, 1], [], []>} : vector<64x32xf32>, vector<32x32xf32>, vector<64x32xf32> -> vector<64x32xf32>
    %400 = vector.broadcast %395 : vector<1x32xf32> to vector<64x32xf32>
    %401 = arith.addf %399, %400 : vector<64x32xf32>
    %cst_125 = arith.constant 0.000000e+00 : f32
    %402 = vector.broadcast %cst_125 : f32 to vector<64x32xf32>
    %403 = arith.maximumf %401, %402 : vector<64x32xf32>
    %cst_126 = arith.constant dense<0.000000e+00> : vector<64x128xf32>
    %404 = tpu.matmul %403, %396, %cst_126 {dimension_numbers = #tpu.dot_dimension_numbers<[1], [0], [0], [1], [0, 0, 1, 1], [], []>} : vector<64x32xf32>, vector<32x128xf32>, vector<64x128xf32> -> vector<64x128xf32>
    %405 = vector.broadcast %397 : vector<1x128xf32> to vector<64x128xf32>
    %406 = arith.addf %404, %405 : vector<64x128xf32>
    %c0_127 = arith.constant 0 : index
    %c0_128 = arith.constant 0 : index
    %407 = vector.load %arg4[%c0_127, %c0_128] : memref<64x128xf32, #tpu.memory_space<vmem>>, vector<64x128xf32>
    tpu.vector_store %arg4[%c0_127, %c0_128], %406 {strides = array<i32>} : memref<64x128xf32, #tpu.memory_space<vmem>>, vector<64x128xf32>,
    return
  }
}

</mosaic_0001>

<llo_original>
// kernel: eq.1
$region0: #{eq.1}
  %s0 = inlined_call_operand.vmem [shape: s32[8,8], index: 0, kind: input, shape index: {}]
  %s1 = inlined_call_operand.vmem [shape: s32[64], index: 1, kind: output, shape index: {}]
  $region1: #{eq.1} parent=0
    #allocation0 [shape = 'u8[4096]{0}', space=vmem, size = 0x1000, scoped, tag = 'scoped mem for output reshape']
    %v2 = vld [vmem:[%s0] sm:$0x1]
    %vm3 = vcmask 64512
    %4 = vst.msk [vmem:[#allocation0] sm:$0x1] %vm3, %v2
    %s5 = scalar_lea.vmem %s0, 7
    %v6 = vld [vmem:[%s5] sm:$0x1]
    %7 = vrot.lane.b32.xlu0 %v6, 56
    %v8 = vpop.permute.xlu0 %7
    %vm9 = vcmask 523712
    %10 = vst.msk [vmem:[#allocation0] sm:$0x1] %vm9, %v8
    %s11 = scalar_lea.vmem %s0, 6
    %v12 = vld [vmem:[%s11] sm:$0x1]
    %13 = vrot.lane.b32.xlu0 %v12, 48
    %v14 = vpop.permute.xlu0 %13
    %vm15 = vcmask 458112
    %16 = vst.msk [vmem:[#allocation0] sm:$0x1] %vm15, %v14
    %s17 = scalar_lea.vmem %s0, 5
    %v18 = vld [vmem:[%s17] sm:$0x1]
    %19 = vrot.lane.b32.xlu0 %v18, 40
    %v20 = vpop.permute.xlu0 %19
    %vm21 = vcmask 392512
    %22 = vst.msk [vmem:[#allocation0] sm:$0x1] %vm21, %v20
    %s23 = scalar_lea.vmem %s0, 4
    %v24 = vld [vmem:[%s23] sm:$0x1]
    %25 = vrot.lane.b32.xlu0 %v24, 32
    %v26 = vpop.permute.xlu0 %25
    %vm27 = vcmask 326912
    %28 = vst.msk [vmem:[#allocation0] sm:$0x1] %vm27, %v26
    %s29 = scalar_lea.vmem %s0, 3
    %v30 = vld [vmem:[%s29] sm:$0x1]
    %31 = vrot.lane.b32.xlu0 %v30, 24
    %v32 = vpop.permute.xlu0 %31
    %vm33 = vcmask 261312
    %34 = vst.msk [vmem:[#allocation0] sm:$0x1] %vm33, %v32
    %s35 = scalar_lea.vmem %s0, 2
    %v36 = vld [vmem:[%s35] sm:$0x1]
    %37 = vrot.lane.b32.xlu0 %v36, 16
    %v38 = vpop.permute.xlu0 %37
    %vm39 = vcmask 195712
    %40 = vst.msk [vmem:[#allocation0] sm:$0x1] %vm39, %v38
    %s41 = scalar_lea.vmem %s0, 1
    %v42 = vld [vmem:[%s41] sm:$0x1]
    %43 = vrot.lane.b32.xlu0 %v42, 8
    %v44 = vpop.permute.xlu0 %43
    %vm45 = vcmask 130112
    %46 = vst.msk [vmem:[#allocation0] sm:$0x1] %vm45, %v44
    %s48 = ssub.s32 2, 1
    %v49 = vld [vmem:[#allocation0] sm:%s48]
    %s51 = ssub.s32 2, 1
    %52 = vst [vmem:[%s1] sm:%s51] %v49

// kernel: decoder_forward.1
$region0: #{decoder_forward.1}
  #allocation0 [shape = 'u32[]', space=smem, size = 0x4, offset = 0x4, fixed_abs, tag = 'smem constant byte address 0x4 - core index']
  #allocation1 [shape = 'u32[72,128]{1,0:T(1,128)}', space=vmem, size = 0x9000, scoped, tag = 'internal scratch']
  #allocation2 [shape = 'f32[64,32]{1,0:T(8,128)}', space=vmem, size = 0x8000, scoped, tag = 'scratch operand']
  #allocation3 [shape = 'f32[64,128]{1,0:T(8,128)}', space=vmem, size = 0x8000, scoped, tag = 'scratch operand']
  %s0 = inlined_call_operand.vmem [shape: f32[64,16], index: 0, kind: input, shape index: {}]
  %s1 = inlined_call_operand.vmem [shape: f32[2,2,8,32], index: 1, kind: input, shape index: {}]
  %s2 = inlined_call_operand.vmem [shape: f32[136,128], index: 2, kind: input, shape index: {}]
  %s3 = inlined_call_operand.vmem [shape: f32[2,65,128], index: 3, kind: input, shape index: {}]
  %s4 = inlined_call_operand.vmem [shape: f32[64,128], index: 4, kind: output, shape index: {}]
  %s5 = sld [smem:[#allocation0]]
  $region26: #{decoder_forward.1} parent=0
    _
  %s7 = ssub.s32 1, %s5
  %s8 = scalar_select 0, %s7, %s5
  // Predicated region
  $region2: #{decoder_forward.1} parent=0 // pred_check
    _
  $region3: #{decoder_forward.1} parent=0 // pred_check_branch
    %10 = sbr.rel (0) target = $region5
  $region4: #{decoder_forward.1} parent=0 // pred_region
    _
  $region5: #{decoder_forward.1} parent=0 // pred_fallthru
    _
  // Predicated region
  $region6: #{decoder_forward.1} parent=0 // pred_check
    _
  $region7: #{decoder_forward.1} parent=0 // pred_check_branch
    %12 = sbr.rel (0) target = $region9
  $region8: #{decoder_forward.1} parent=0 // pred_region
    _
  $region9: #{decoder_forward.1} parent=0 // pred_fallthru
    _
  // Predicated region
  $region10: #{decoder_forward.1} parent=0 // pred_check
    _
  $region11: #{decoder_forward.1} parent=0 // pred_check_branch
    %14 = sbr.rel (0) target = $region13
  $region12: #{decoder_forward.1} parent=0 // pred_region
    _
  $region13: #{decoder_forward.1} parent=0 // pred_fallthru
    _
  // Predicated region
  $region14: #{decoder_forward.1} parent=0 // pred_check
    _
  $region15: #{decoder_forward.1} parent=0 // pred_check_branch
    %16 = sbr.rel (0) target = $region17
  $region16: #{decoder_forward.1} parent=0 // pred_region
    _
  $region17: #{decoder_forward.1} parent=0 // pred_fallthru
    _
  %v17 = vld [vmem:[%s2] sm:$0xff]
  %v18 = vld [vmem:[%s2 + $0x8] sm:$0xff]
  %v19 = vld [vmem:[%s2 + $0x10] sm:$0xff]
  %v20 = vld [vmem:[%s2 + $0x18] sm:$0xff]
  %v21 = vld [vmem:[%s2 + $0x20] sm:$0xff]
  %v22 = vld [vmem:[%s2 + $0x28] sm:$0xff]
  %v23 = vld [vmem:[%s2 + $0x30] sm:$0x1]
  %v24 = vld [vmem:[%s0] sm:$0xff]
  %v25 = vld [vmem:[%s0 + $0x8] sm:$0xff]
  %v26 = vld [vmem:[%s0 + $0x10] sm:$0xff]
  %v27 = vld [vmem:[%s0 + $0x18] sm:$0xff]
  %v28 = vld [vmem:[%s0 + $0x20] sm:$0xff]
  %v29 = vld [vmem:[%s0 + $0x28] sm:$0xff]
  %v30 = vld [vmem:[%s0 + $0x30] sm:$0xff]
  %v31 = vld [vmem:[%s0 + $0x38] sm:$0xff]
  %vm32 = vcmask 130048
  %v34 = vsel %vm32, %v24, 0
  %v37 = vsel %vm32, %v25, 0
  %v40 = vsel %vm32, %v26, 0
  %v43 = vsel %vm32, %v27, 0
  %v46 = vsel %vm32, %v28, 0
  %v49 = vsel %vm32, %v29, 0
  %v52 = vsel %vm32, %v30, 0
  %v55 = vsel %vm32, %v31, 0
  %57 = vmatpush.msra.mxu0 0.0
  %58 = vmatpush.msra.mxu0 0.0
  %59 = vmatpush.msra.mxu0 0.0
  %60 = vmatpush.msra.mxu0 0.0
  %61 = vmatpush.msra.mxu0 0.0
  %62 = vmatpush.msra.mxu0 0.0
  %63 = vmatpush.msra.mxu0 0.0
  %64 = vmatpush.msra.mxu0 0.0
  %65 = vmatpush.msra.mxu0 0.0
  %66 = vmatpush.msra.mxu0 0.0
  %67 = vmatpush.msra.mxu0 0.0
  %68 = vmatpush.msra.mxu0 0.0
  %69 = vmatpush.msra.mxu0 0.0
  %70 = vmatpush.msra.mxu0 0.0
  %71 = vmatpush.msra.mxu0 %v18
  %72 = vmatpush.msra.mxu0 %v17
  %73 = vmatmul.f32.gmra.mxu0 %v34
  %v74 = vpop.f32.mrf.mxu0
  %v75 = vadd.f32 0.0, %v74
  %76 = vmatmul.f32.gmra.mxu0 %v37
  %v77 = vpop.f32.mrf.mxu0
  %v78 = vadd.f32 0.0, %v77
  %79 = vmatmul.f32.gmra.mxu0 %v40
  %v80 = vpop.f32.mrf.mxu0
  %v81 = vadd.f32 0.0, %v80
  %82 = vmatmul.f32.gmra.mxu0 %v43
  %v83 = vpop.f32.mrf.mxu0
  %v84 = vadd.f32 0.0, %v83
  %85 = vmatmul.f32.gmra.mxu0 %v46
  %v86 = vpop.f32.mrf.mxu0
  %v87 = vadd.f32 0.0, %v86
  %88 = vmatmul.f32.gmra.mxu0 %v49
  %v89 = vpop.f32.mrf.mxu0
  %v90 = vadd.f32 0.0, %v89
  %91 = vmatmul.f32.gmra.mxu0 %v52
  %v92 = vpop.f32.mrf.mxu0
  %v93 = vadd.f32 0.0, %v92
  %94 = vmatmul.f32.gmra.mxu0 %v55
  %v95 = vpop.f32.mrf.mxu0
  %v96 = vadd.f32 0.0, %v95
  %97 = vdwg.mxu0
  %v98 = vmax.f32 %v75, 0.0
  %v99 = vmax.f32 %v78, 0.0
  %v100 = vmax.f32 %v81, 0.0
  %v101 = vmax.f32 %v84, 0.0
  %v102 = vmax.f32 %v87, 0.0
  %v103 = vmax.f32 %v90, 0.0
  %v104 = vmax.f32 %v93, 0.0
  %v105 = vmax.f32 %v96, 0.0
  %v106 = vperm.slane %v23, 0
  %vm107 = vcmask 261120
  %v109 = vsel %vm107, %v98, 0
  %v112 = vsel %vm107, %v99, 0
  %v115 = vsel %vm107, %v100, 0
  %v118 = vsel %vm107, %v101, 0
  %v121 = vsel %vm107, %v102, 0
  %v124 = vsel %vm107, %v103, 0
  %v127 = vsel %vm107, %v104, 0
  %v130 = vsel %vm107, %v105, 0
  %132 = vmatpush.msra.mxu0 0.0
  %133 = vmatpush.msra.mxu0 0.0
  %134 = vmatpush.msra.mxu0 0.0
  %135 = vmatpush.msra.mxu0 0.0
  %136 = vmatpush.msra.mxu0 0.0
  %137 = vmatpush.msra.mxu0 0.0
  %138 = vmatpush.msra.mxu0 0.0
  %139 = vmatpush.msra.mxu0 0.0
  %140 = vmatpush.msra.mxu0 0.0
  %141 = vmatpush.msra.mxu0 0.0
  %142 = vmatpush.msra.mxu0 0.0
  %143 = vmatpush.msra.mxu0 0.0
  %144 = vmatpush.msra.mxu0 %v22
  %145 = vmatpush.msra.mxu0 %v21
  %146 = vmatpush.msra.mxu0 %v20
  %147 = vmatpush.msra.mxu0 %v19
  %148 = vmatmul.f32.gmra.mxu0 %v109
  %v149 = vpop.f32.mrf.mxu0
  %v150 = vadd.f32 %v106, %v149
  %151 = vmatmul.f32.gmra.mxu0 %v112
  %v152 = vpop.f32.mrf.mxu0
  %v153 = vadd.f32 %v106, %v152
  %154 = vmatmul.f32.gmra.mxu0 %v115
  %v155 = vpop.f32.mrf.mxu0
  %v156 = vadd.f32 %v106, %v155
  %157 = vmatmul.f32.gmra.mxu0 %v118
  %v158 = vpop.f32.mrf.mxu0
  %v159 = vadd.f32 %v106, %v158
  %160 = vmatmul.f32.gmra.mxu0 %v121
  %v161 = vpop.f32.mrf.mxu0
  %v162 = vadd.f32 %v106, %v161
  %163 = vmatmul.f32.gmra.mxu0 %v124
  %v164 = vpop.f32.mrf.mxu0
  %v165 = vadd.f32 %v106, %v164
  %166 = vmatmul.f32.gmra.mxu0 %v127
  %v167 = vpop.f32.mrf.mxu0
  %v168 = vadd.f32 %v106, %v167
  %169 = vmatmul.f32.gmra.mxu0 %v130
  %v170 = vpop.f32.mrf.mxu0
  %v171 = vadd.f32 %v106, %v170
  %172 = vdwg.mxu0
  %v173 = vmax.f32 %v150, 0.0
  %v174 = vmax.f32 %v153, 0.0
  %v175 = vmax.f32 %v156, 0.0
  %v176 = vmax.f32 %v159, 0.0
  %v177 = vmax.f32 %v162, 0.0
  %v178 = vmax.f32 %v165, 0.0
  %v179 = vmax.f32 %v168, 0.0
  %v180 = vmax.f32 %v171, 0.0
  %181 = vst.msk [vmem:[#allocation2] sm:$0xff] %vm107, %v173
  %182 = vst.msk [vmem:[#allocation2 + $0x8] sm:$0xff] %vm107, %v174
  %183 = vst.msk [vmem:[#allocation2 + $0x10] sm:$0xff] %vm107, %v175
  %184 = vst.msk [vmem:[#allocation2 + $0x18] sm:$0xff] %vm107, %v176
  %185 = vst.msk [vmem:[#allocation2 + $0x20] sm:$0xff] %vm107, %v177
  %186 = vst.msk [vmem:[#allocation2 + $0x28] sm:$0xff] %vm107, %v178
  %187 = vst.msk [vmem:[#allocation2 + $0x30] sm:$0xff] %vm107, %v179
  %188 = vst.msk [vmem:[#allocation2 + $0x38] sm:$0xff] %vm107, %v180
  %v189 = vlaneseq
  %v190 = vand.u32 %v189, 127
  %vm191 = vcmp.ge.s32.totalorder %v190, 64
  %vm192 = vcmp.lt.s32.totalorder %v190, 96
  %vm193 = vmand %vm191, %vm192
  %v194 = vsel %vm193, 1.0, 0.5
  %v195 = vsel %vm193, 0.0, 0.5
  %v196 = vld [vmem:[%s3] sm:$0xff]
  %v197 = vld [vmem:[%s3 + $0x8] sm:$0xff]
  %v198 = vld [vmem:[%s3 + $0x10] sm:$0xff]
  %v199 = vld [vmem:[%s3 + $0x18] sm:$0xff]
  %v200 = vld [vmem:[%s3 + $0x20] sm:$0xff]
  %v201 = vld [vmem:[%s3 + $0x28] sm:$0xff]
  %v202 = vld [vmem:[%s3 + $0x30] sm:$0xff]
  %v203 = vld [vmem:[%s3 + $0x38] sm:$0xff]
  %v204 = vld [vmem:[%s3 + $0x40] sm:$0x1]
  %v205 = vld [vmem:[#allocation2] sm:$0xff]
  %v206 = vld [vmem:[#allocation2 + $0x8] sm:$0xff]
  %v207 = vld [vmem:[#allocation2 + $0x10] sm:$0xff]
  %v208 = vld [vmem:[#allocation2 + $0x18] sm:$0xff]
  %v209 = vld [vmem:[#allocation2 + $0x20] sm:$0xff]
  %v210 = vld [vmem:[#allocation2 + $0x28] sm:$0xff]
  %v211 = vld [vmem:[#allocation2 + $0x30] sm:$0xff]
  %v212 = vld [vmem:[#allocation2 + $0x38] sm:$0xff]
  %v213 = vperm.slane %v204, 0
  %v215 = vsel %vm107, %v205, 0
  %v218 = vsel %vm107, %v206, 0
  %v221 = vsel %vm107, %v207, 0
  %v224 = vsel %vm107, %v208, 0
  %v227 = vsel %vm107, %v209, 0
  %v230 = vsel %vm107, %v210, 0
  %v233 = vsel %vm107, %v211, 0
  %v236 = vsel %vm107, %v212, 0
  %238 = vmatpush.msra.mxu0 0.0
  %239 = vmatpush.msra.mxu0 0.0
  %240 = vmatpush.msra.mxu0 0.0
  %241 = vmatpush.msra.mxu0 0.0
  %242 = vmatpush.msra.mxu0 0.0
  %243 = vmatpush.msra.mxu0 0.0
  %244 = vmatpush.msra.mxu0 0.0
  %245 = vmatpush.msra.mxu0 0.0
  %246 = vmatpush.msra.mxu0 0.0
  %247 = vmatpush.msra.mxu0 0.0
  %248 = vmatpush.msra.mxu0 0.0
  %249 = vmatpush.msra.mxu0 0.0
  %250 = vmatpush.msra.mxu0 %v199
  %251 = vmatpush.msra.mxu0 %v198
  %252 = vmatpush.msra.mxu0 %v197
  %253 = vmatpush.msra.mxu0 %v196
  %254 = vmatmul.f32.gmra.mxu0 %v215
  %v255 = vpop.f32.mrf.mxu0
  %v256 = vadd.f32 %v213, %v255
  %257 = vmatmul.f32.gmra.mxu0 %v218
  %v258 = vpop.f32.mrf.mxu0
  %v259 = vadd.f32 %v213, %v258
  %260 = vmatmul.f32.gmra.mxu0 %v221
  %v261 = vpop.f32.mrf.mxu0
  %v262 = vadd.f32 %v213, %v261
  %263 = vmatmul.f32.gmra.mxu0 %v224
  %v264 = vpop.f32.mrf.mxu0
  %v265 = vadd.f32 %v213, %v264
  %266 = vmatmul.f32.gmra.mxu0 %v227
  %v267 = vpop.f32.mrf.mxu0
  %v268 = vadd.f32 %v213, %v267
  %269 = vmatmul.f32.gmra.mxu0 %v230
  %v270 = vpop.f32.mrf.mxu0
  %v271 = vadd.f32 %v213, %v270
  %272 = vmatmul.f32.gmra.mxu0 %v233
  %v273 = vpop.f32.mrf.mxu0
  %v274 = vadd.f32 %v213, %v273
  %275 = vmatmul.f32.gmra.mxu0 %v236
  %v276 = vpop.f32.mrf.mxu0
  %v277 = vadd.f32 %v213, %v276
  %278 = vdwg.mxu0
  %279 = vst [vmem:[#allocation3] sm:$0xff] %v256
  %280 = vst [vmem:[#allocation3 + $0x8] sm:$0xff] %v259
  %281 = vst [vmem:[#allocation3 + $0x10] sm:$0xff] %v262
  %282 = vst [vmem:[#allocation3 + $0x18] sm:$0xff] %v265
  %283 = vst [vmem:[#allocation3 + $0x20] sm:$0xff] %v268
  %284 = vst [vmem:[#allocation3 + $0x28] sm:$0xff] %v271
  %285 = vst [vmem:[#allocation3 + $0x30] sm:$0xff] %v274
  %286 = vst [vmem:[#allocation3 + $0x38] sm:$0xff] %v277
  %v287 = vld [vmem:[%s1] sm:$0xff]
  %s288 = scalar_lea.vmem %s1, 16
  %v289 = vld [vmem:[%s288] sm:$0xff]
  %v290 = vld [vmem:[#allocation3] sm:$0xff]
  %v292 = vsel %vm107, %v287, 0
  %294 = vmatpush.msra.mxu0 0.0
  %295 = vmatpush.msra.mxu0 0.0
  %296 = vmatpush.msra.mxu0 0.0
  %297 = vmatpush.msra.mxu0 0.0
  %298 = vmatpush.msra.mxu0 0.0
  %299 = vmatpush.msra.mxu0 0.0
  %300 = vmatpush.msra.mxu0 0.0
  %301 = vmatpush.msra.mxu0 0.0
  %302 = vmatpush.msra.mxu0 0.0
  %303 = vmatpush.msra.mxu0 0.0
  %304 = vmatpush.msra.mxu0 0.0
  %305 = vmatpush.msra.mxu0 0.0
  %306 = vmatpush.msra.mxu0 %v203
  %307 = vmatpush.msra.mxu0 %v202
  %308 = vmatpush.msra.mxu0 %v201
  %309 = vmatpush.msra.mxu0 %v200
  %310 = vmatmul.f32.gmra.mxu0 %v292
  %v311 = vpop.f32.mrf.mxu0
  %v312 = vadd.f32 0.0, %v311
  %313 = vdwg.mxu0
  %v314 = vadd.f32 %v290, %v312
  %v315 = vmul.f32 %v314, %v194
  %v316 = vtanh.pop %v315
  %v317 = vmul.f32 %v194, %v316
  %v318 = vadd.f32 %v317, %v195
  %320 = vrot.lane.b32.xlu0 %v289, 32
  %v321 = vpop.permute.xlu0 %320
  %v323 = vmul.f32 %v318, %v321
  %325 = vrot.lane.b32.xlu0 %v318, 64
  %v326 = vpop.permute.xlu0 %325
  %v328 = vmul.f32 %v318, %v326
  %330 = vrot.lane.b32.xlu0 %v328, 32
  %v331 = vpop.permute.xlu0 %330
  %v333 = vadd.f32 %v323, %v331
  %v334 = vtanh.pop %v333
  %336 = vrot.lane.b32.xlu0 %v334, 64
  %v337 = vpop.permute.xlu0 %336
  %v339 = vmul.f32 %v318, %v337
  %341 = vrot.lane.b32.xlu0 %v339, 32
  %v342 = vpop.permute.xlu0 %341
  %344 = vst.msk [vmem:[#allocation2] sm:$0xff] %vm107, %v342
  %s345 = scalar_lea.vmem [#allocation3], 8
  %v346 = vld [vmem:[%s345] sm:$0xff]
  %v347 = vsel %vm107, %v342, 0
  %349 = vmatpush.msra.mxu0 0.0
  %350 = vmatpush.msra.mxu0 0.0
  %351 = vmatpush.msra.mxu0 0.0
  %352 = vmatpush.msra.mxu0 0.0
  %353 = vmatpush.msra.mxu0 0.0
  %354 = vmatpush.msra.mxu0 0.0
  %355 = vmatpush.msra.mxu0 0.0
  %356 = vmatpush.msra.mxu0 0.0
  %357 = vmatpush.msra.mxu0 0.0
  %358 = vmatpush.msra.mxu0 0.0
  %359 = vmatpush.msra.mxu0 0.0
  %360 = vmatpush.msra.mxu0 0.0
  %361 = vmatpush.msra.mxu0 %v203
  %362 = vmatpush.msra.mxu0 %v202
  %363 = vmatpush.msra.mxu0 %v201
  %364 = vmatpush.msra.mxu0 %v200
  %365 = vmatmul.f32.gmra.mxu0 %v347
  %v366 = vpop.f32.mrf.mxu0
  %v367 = vadd.f32 0.0, %v366
  %368 = vdwg.mxu0
  %v369 = vadd.f32 %v346, %v367
  %v370 = vmul.f32 %v369, %v194
  %v371 = vtanh.pop %v370
  %v372 = vmul.f32 %v194, %v371
  %v373 = vadd.f32 %v372, %v195
  %v374 = vmul.f32 %v373, %v333
  %376 = vrot.lane.b32.xlu0 %v373, 64
  %v377 = vpop.permute.xlu0 %376
  %v379 = vmul.f32 %v373, %v377
  %381 = vrot.lane.b32.xlu0 %v379, 32
  %v382 = vpop.permute.xlu0 %381
  %v384 = vadd.f32 %v374, %v382
  %v385 = vtanh.pop %v384
  %387 = vrot.lane.b32.xlu0 %v385, 64
  %v388 = vpop.permute.xlu0 %387
  %v390 = vmul.f32 %v373, %v388
  %392 = vrot.lane.b32.xlu0 %v390, 32
  %v393 = vpop.permute.xlu0 %392
  %s395 = scalar_lea.vmem [#allocation2], 8
  %396 = vst.msk [vmem:[%s395] sm:$0xff] %vm107, %v393
  %s397 = scalar_lea.vmem [#allocation3], 16
  %v398 = vld [vmem:[%s397] sm:$0xff]
  %v399 = vsel %vm107, %v393, 0
  %401 = vmatpush.msra.mxu0 0.0
  %402 = vmatpush.msra.mxu0 0.0
  %403 = vmatpush.msra.mxu0 0.0
  %404 = vmatpush.msra.mxu0 0.0
  %405 = vmatpush.msra.mxu0 0.0
  %406 = vmatpush.msra.mxu0 0.0
  %407 = vmatpush.msra.mxu0 0.0
  %408 = vmatpush.msra.mxu0 0.0
  %409 = vmatpush.msra.mxu0 0.0
  %410 = vmatpush.msra.mxu0 0.0
  %411 = vmatpush.msra.mxu0 0.0
  %412 = vmatpush.msra.mxu0 0.0
  %413 = vmatpush.msra.mxu0 %v203
  %414 = vmatpush.msra.mxu0 %v202
  %415 = vmatpush.msra.mxu0 %v201
  %416 = vmatpush.msra.mxu0 %v200
  %417 = vmatmul.f32.gmra.mxu0 %v399
  %v418 = vpop.f32.mrf.mxu0
  %v419 = vadd.f32 0.0, %v418
  %420 = vdwg.mxu0
  %v421 = vadd.f32 %v398, %v419
  %v422 = vmul.f32 %v421, %v194
  %v423 = vtanh.pop %v422
  %v424 = vmul.f32 %v194, %v423
  %v425 = vadd.f32 %v424, %v195
  %v426 = vmul.f32 %v425, %v384
  %428 = vrot.lane.b32.xlu0 %v425, 64
  %v429 = vpop.permute.xlu0 %428
  %v431 = vmul.f32 %v425, %v429
  %433 = vrot.lane.b32.xlu0 %v431, 32
  %v434 = vpop.permute.xlu0 %433
  %v436 = vadd.f32 %v426, %v434
  %v437 = vtanh.pop %v436
  %439 = vrot.lane.b32.xlu0 %v437, 64
  %v440 = vpop.permute.xlu0 %439
  %v442 = vmul.f32 %v425, %v440
  %444 = vrot.lane.b32.xlu0 %v442, 32
  %v445 = vpop.permute.xlu0 %444
  %s447 = scalar_lea.vmem [#allocation2], 16
  %448 = vst.msk [vmem:[%s447] sm:$0xff] %vm107, %v445
  %s449 = scalar_lea.vmem [#allocation3], 24
  %v450 = vld [vmem:[%s449] sm:$0xff]
  %v451 = vsel %vm107, %v445, 0
  %453 = vmatpush.msra.mxu0 0.0
  %454 = vmatpush.msra.mxu0 0.0
  %455 = vmatpush.msra.mxu0 0.0
  %456 = vmatpush.msra.mxu0 0.0
  %457 = vmatpush.msra.mxu0 0.0
  %458 = vmatpush.msra.mxu0 0.0
  %459 = vmatpush.msra.mxu0 0.0
  %460 = vmatpush.msra.mxu0 0.0
  %461 = vmatpush.msra.mxu0 0.0
  %462 = vmatpush.msra.mxu0 0.0
  %463 = vmatpush.msra.mxu0 0.0
  %464 = vmatpush.msra.mxu0 0.0
  %465 = vmatpush.msra.mxu0 %v203
  %466 = vmatpush.msra.mxu0 %v202
  %467 = vmatpush.msra.mxu0 %v201
  %468 = vmatpush.msra.mxu0 %v200
  %469 = vmatmul.f32.gmra.mxu0 %v451
  %v470 = vpop.f32.mrf.mxu0
  %v471 = vadd.f32 0.0, %v470
  %472 = vdwg.mxu0
  %v473 = vadd.f32 %v450, %v471
  %v474 = vmul.f32 %v473, %v194
  %v475 = vtanh.pop %v474
  %v476 = vmul.f32 %v194, %v475
  %v477 = vadd.f32 %v476, %v195
  %v478 = vmul.f32 %v477, %v436
  %480 = vrot.lane.b32.xlu0 %v477, 64
  %v481 = vpop.permute.xlu0 %480
  %v483 = vmul.f32 %v477, %v481
  %485 = vrot.lane.b32.xlu0 %v483, 32
  %v486 = vpop.permute.xlu0 %485
  %v488 = vadd.f32 %v478, %v486
  %v489 = vtanh.pop %v488
  %491 = vrot.lane.b32.xlu0 %v489, 64
  %v492 = vpop.permute.xlu0 %491
  %v494 = vmul.f32 %v477, %v492
  %496 = vrot.lane.b32.xlu0 %v494, 32
  %v497 = vpop.permute.xlu0 %496
  %s499 = scalar_lea.vmem [#allocation2], 24
  %500 = vst.msk [vmem:[%s499] sm:$0xff] %vm107, %v497
  %s501 = scalar_lea.vmem [#allocation3], 32
  %v502 = vld [vmem:[%s501] sm:$0xff]
  %v503 = vsel %vm107, %v497, 0
  %505 = vmatpush.msra.mxu0 0.0
  %506 = vmatpush.msra.mxu0 0.0
  %507 = vmatpush.msra.mxu0 0.0
  %508 = vmatpush.msra.mxu0 0.0
  %509 = vmatpush.msra.mxu0 0.0
  %510 = vmatpush.msra.mxu0 0.0
  %511 = vmatpush.msra.mxu0 0.0
  %512 = vmatpush.msra.mxu0 0.0
  %513 = vmatpush.msra.mxu0 0.0
  %514 = vmatpush.msra.mxu0 0.0
  %515 = vmatpush.msra.mxu0 0.0
  %516 = vmatpush.msra.mxu0 0.0
  %517 = vmatpush.msra.mxu0 %v203
  %518 = vmatpush.msra.mxu0 %v202
  %519 = vmatpush.msra.mxu0 %v201
  %520 = vmatpush.msra.mxu0 %v200
  %521 = vmatmul.f32.gmra.mxu0 %v503
  %v522 = vpop.f32.mrf.mxu0
  %v523 = vadd.f32 0.0, %v522
  %524 = vdwg.mxu0
  %v525 = vadd.f32 %v502, %v523
  %v526 = vmul.f32 %v525, %v194
  %v527 = vtanh.pop %v526
  %v528 = vmul.f32 %v194, %v527
  %v529 = vadd.f32 %v528, %v195
  %v530 = vmul.f32 %v529, %v488
  %532 = vrot.lane.b32.xlu0 %v529, 64
  %v533 = vpop.permute.xlu0 %532
  %v535 = vmul.f32 %v529, %v533
  %537 = vrot.lane.b32.xlu0 %v535, 32
  %v538 = vpop.permute.xlu0 %537
  %v540 = vadd.f32 %v530, %v538
  %v541 = vtanh.pop %v540
  %543 = vrot.lane.b32.xlu0 %v541, 64
  %v544 = vpop.permute.xlu0 %543
  %v546 = vmul.f32 %v529, %v544
  %548 = vrot.lane.b32.xlu0 %v546, 32
  %v549 = vpop.permute.xlu0 %548
  %s551 = scalar_lea.vmem [#allocation2], 32
  %552 = vst.msk [vmem:[%s551] sm:$0xff] %vm107, %v549
  %s553 = scalar_lea.vmem [#allocation3], 40
  %v554 = vld [vmem:[%s553] sm:$0xff]
  %v555 = vsel %vm107, %v549, 0
  %557 = vmatpush.msra.mxu0 0.0
  %558 = vmatpush.msra.mxu0 0.0
  %559 = vmatpush.msra.mxu0 0.0
  %560 = vmatpush.msra.mxu0 0.0
  %561 = vmatpush.msra.mxu0 0.0
  %562 = vmatpush.msra.mxu0 0.0
  %563 = vmatpush.msra.mxu0 0.0
  %564 = vmatpush.msra.mxu0 0.0
  %565 = vmatpush.msra.mxu0 0.0
  %566 = vmatpush.msra.mxu0 0.0
  %567 = vmatpush.msra.mxu0 0.0
  %568 = vmatpush.msra.mxu0 0.0
  %569 = vmatpush.msra.mxu0 %v203
  %570 = vmatpush.msra.mxu0 %v202
  %571 = vmatpush.msra.mxu0 %v201
  %572 = vmatpush.msra.mxu0 %v200
  %573 = vmatmul.f32.gmra.mxu0 %v555
  %v574 = vpop.f32.mrf.mxu0
  %v575 = vadd.f32 0.0, %v574
  %576 = vdwg.mxu0
  %v577 = vadd.f32 %v554, %v575
  %v578 = vmul.f32 %v577, %v194
  %v579 = vtanh.pop %v578
  %v580 = vmul.f32 %v194, %v579
  %v581 = vadd.f32 %v580, %v195
  %v582 = vmul.f32 %v581, %v540
  %584 = vrot.lane.b32.xlu0 %v581, 64
  %v585 = vpop.permute.xlu0 %584
  %v587 = vmul.f32 %v581, %v585
  %589 = vrot.lane.b32.xlu0 %v587, 32
  %v590 = vpop.permute.xlu0 %589
  %v592 = vadd.f32 %v582, %v590
  %v593 = vtanh.pop %v592
  %595 = vrot.lane.b32.xlu0 %v593, 64
  %v596 = vpop.permute.xlu0 %595
  %v598 = vmul.f32 %v581, %v596
  %600 = vrot.lane.b32.xlu0 %v598, 32
  %v601 = vpop.permute.xlu0 %600
  %s603 = scalar_lea.vmem [#allocation2], 40
  %604 = vst.msk [vmem:[%s603] sm:$0xff] %vm107, %v601
  %s605 = scalar_lea.vmem [#allocation3], 48
  %v606 = vld [vmem:[%s605] sm:$0xff]
  %v607 = vsel %vm107, %v601, 0
  %609 = vmatpush.msra.mxu0 0.0
  %610 = vmatpush.msra.mxu0 0.0
  %611 = vmatpush.msra.mxu0 0.0
  %612 = vmatpush.msra.mxu0 0.0
  %613 = vmatpush.msra.mxu0 0.0
  %614 = vmatpush.msra.mxu0 0.0
  %615 = vmatpush.msra.mxu0 0.0
  %616 = vmatpush.msra.mxu0 0.0
  %617 = vmatpush.msra.mxu0 0.0
  %618 = vmatpush.msra.mxu0 0.0
  %619 = vmatpush.msra.mxu0 0.0
  %620 = vmatpush.msra.mxu0 0.0
  %621 = vmatpush.msra.mxu0 %v203
  %622 = vmatpush.msra.mxu0 %v202
  %623 = vmatpush.msra.mxu0 %v201
  %624 = vmatpush.msra.mxu0 %v200
  %625 = vmatmul.f32.gmra.mxu0 %v607
  %v626 = vpop.f32.mrf.mxu0
  %v627 = vadd.f32 0.0, %v626
  %628 = vdwg.mxu0
  %v629 = vadd.f32 %v606, %v627
  %v630 = vmul.f32 %v629, %v194
  %v631 = vtanh.pop %v630
  %v632 = vmul.f32 %v194, %v631
  %v633 = vadd.f32 %v632, %v195
  %v634 = vmul.f32 %v633, %v592
  %636 = vrot.lane.b32.xlu0 %v633, 64
  %v637 = vpop.permute.xlu0 %636
  %v639 = vmul.f32 %v633, %v637
  %641 = vrot.lane.b32.xlu0 %v639, 32
  %v642 = vpop.permute.xlu0 %641
  %v644 = vadd.f32 %v634, %v642
  %v645 = vtanh.pop %v644
  %647 = vrot.lane.b32.xlu0 %v645, 64
  %v648 = vpop.permute.xlu0 %647
  %v650 = vmul.f32 %v633, %v648
  %652 = vrot.lane.b32.xlu0 %v650, 32
  %v653 = vpop.permute.xlu0 %652
  %s655 = scalar_lea.vmem [#allocation2], 48
  %656 = vst.msk [vmem:[%s655] sm:$0xff] %vm107, %v653
  %s657 = scalar_lea.vmem [#allocation3], 56
  %v658 = vld [vmem:[%s657] sm:$0xff]
  %v659 = vsel %vm107, %v653, 0
  %661 = vmatpush.msra.mxu0 0.0
  %662 = vmatpush.msra.mxu0 0.0
  %663 = vmatpush.msra.mxu0 0.0
  %664 = vmatpush.msra.mxu0 0.0
  %665 = vmatpush.msra.mxu0 0.0
  %666 = vmatpush.msra.mxu0 0.0
  %667 = vmatpush.msra.mxu0 0.0
  %668 = vmatpush.msra.mxu0 0.0
  %669 = vmatpush.msra.mxu0 0.0
  %670 = vmatpush.msra.mxu0 0.0
  %671 = vmatpush.msra.mxu0 0.0
  %672 = vmatpush.msra.mxu0 0.0
  %673 = vmatpush.msra.mxu0 %v203
  %674 = vmatpush.msra.mxu0 %v202
  %675 = vmatpush.msra.mxu0 %v201
  %676 = vmatpush.msra.mxu0 %v200
  %677 = vmatmul.f32.gmra.mxu0 %v659
  %v678 = vpop.f32.mrf.mxu0
  %v679 = vadd.f32 0.0, %v678
  %680 = vdwg.mxu0
  %v681 = vadd.f32 %v658, %v679
  %v682 = vmul.f32 %v681, %v194
  %v683 = vtanh.pop %v682
  %v684 = vmul.f32 %v194, %v683
  %v685 = vadd.f32 %v684, %v195
  %v686 = vmul.f32 %v685, %v644
  %688 = vrot.lane.b32.xlu0 %v685, 64
  %v689 = vpop.permute.xlu0 %688
  %v691 = vmul.f32 %v685, %v689
  %693 = vrot.lane.b32.xlu0 %v691, 32
  %v694 = vpop.permute.xlu0 %693
  %v696 = vadd.f32 %v686, %v694
  %v697 = vtanh.pop %v696
  %699 = vrot.lane.b32.xlu0 %v697, 64
  %v700 = vpop.permute.xlu0 %699
  %v702 = vmul.f32 %v685, %v700
  %704 = vrot.lane.b32.xlu0 %v702, 32
  %v705 = vpop.permute.xlu0 %704
  %s707 = scalar_lea.vmem [#allocation2], 56
  %708 = vst.msk [vmem:[%s707] sm:$0xff] %vm107, %v705
  %s709 = scalar_lea.vmem %s3, 72
  %v710 = vld [vmem:[%s709] sm:$0xff]
  %v711 = vld [vmem:[%s709 + $0x8] sm:$0xff]
  %v712 = vld [vmem:[%s709 + $0x10] sm:$0xff]
  %v713 = vld [vmem:[%s709 + $0x18] sm:$0xff]
  %v714 = vld [vmem:[%s709 + $0x20] sm:$0xff]
  %v715 = vld [vmem:[%s709 + $0x28] sm:$0xff]
  %v716 = vld [vmem:[%s709 + $0x30] sm:$0xff]
  %v717 = vld [vmem:[%s709 + $0x38] sm:$0xff]
  %v718 = vld [vmem:[%s709 + $0x40] sm:$0x1]
  %v719 = vld [vmem:[#allocation2] sm:$0xff]
  %v720 = vld [vmem:[#allocation2 + $0x8] sm:$0xff]
  %v721 = vld [vmem:[#allocation2 + $0x10] sm:$0xff]
  %v722 = vld [vmem:[#allocation2 + $0x18] sm:$0xff]
  %v723 = vld [vmem:[#allocation2 + $0x20] sm:$0xff]
  %v724 = vld [vmem:[#allocation2 + $0x28] sm:$0xff]
  %v725 = vld [vmem:[#allocation2 + $0x30] sm:$0xff]
  %v726 = vld [vmem:[#allocation2 + $0x38] sm:$0xff]
  %v727 = vperm.slane %v718, 0
  %v729 = vsel %vm107, %v719, 0
  %v732 = vsel %vm107, %v720, 0
  %v735 = vsel %vm107, %v721, 0
  %v738 = vsel %vm107, %v722, 0
  %v741 = vsel %vm107, %v723, 0
  %v744 = vsel %vm107, %v724, 0
  %v747 = vsel %vm107, %v725, 0
  %v750 = vsel %vm107, %v726, 0
  %752 = vmatpush.msra.mxu0 0.0
  %753 = vmatpush.msra.mxu0 0.0
  %754 = vmatpush.msra.mxu0 0.0
  %755 = vmatpush.msra.mxu0 0.0
  %756 = vmatpush.msra.mxu0 0.0
  %757 = vmatpush.msra.mxu0 0.0
  %758 = vmatpush.msra.mxu0 0.0
  %759 = vmatpush.msra.mxu0 0.0
  %760 = vmatpush.msra.mxu0 0.0
  %761 = vmatpush.msra.mxu0 0.0
  %762 = vmatpush.msra.mxu0 0.0
  %763 = vmatpush.msra.mxu0 0.0
  %764 = vmatpush.msra.mxu0 %v713
  %765 = vmatpush.msra.mxu0 %v712
  %766 = vmatpush.msra.mxu0 %v711
  %767 = vmatpush.msra.mxu0 %v710
  %768 = vmatmul.f32.gmra.mxu0 %v729
  %v769 = vpop.f32.mrf.mxu0
  %v770 = vadd.f32 %v727, %v769
  %771 = vmatmul.f32.gmra.mxu0 %v732
  %v772 = vpop.f32.mrf.mxu0
  %v773 = vadd.f32 %v727, %v772
  %774 = vmatmul.f32.gmra.mxu0 %v735
  %v775 = vpop.f32.mrf.mxu0
  %v776 = vadd.f32 %v727, %v775
  %777 = vmatmul.f32.gmra.mxu0 %v738
  %v778 = vpop.f32.mrf.mxu0
  %v779 = vadd.f32 %v727, %v778
  %780 = vmatmul.f32.gmra.mxu0 %v741
  %v781 = vpop.f32.mrf.mxu0
  %v782 = vadd.f32 %v727, %v781
  %783 = vmatmul.f32.gmra.mxu0 %v744
  %v784 = vpop.f32.mrf.mxu0
  %v785 = vadd.f32 %v727, %v784
  %786 = vmatmul.f32.gmra.mxu0 %v747
  %v787 = vpop.f32.mrf.mxu0
  %v788 = vadd.f32 %v727, %v787
  %789 = vmatmul.f32.gmra.mxu0 %v750
  %v790 = vpop.f32.mrf.mxu0
  %v791 = vadd.f32 %v727, %v790
  %792 = vdwg.mxu0
  %793 = vst [vmem:[#allocation3] sm:$0xff] %v770
  %794 = vst [vmem:[#allocation3 + $0x8] sm:$0xff] %v773
  %795 = vst [vmem:[#allocation3 + $0x10] sm:$0xff] %v776
  %796 = vst [vmem:[#allocation3 + $0x18] sm:$0xff] %v779
  %797 = vst [vmem:[#allocation3 + $0x20] sm:$0xff] %v782
  %798 = vst [vmem:[#allocation3 + $0x28] sm:$0xff] %v785
  %799 = vst [vmem:[#allocation3 + $0x30] sm:$0xff] %v788
  %800 = vst [vmem:[#allocation3 + $0x38] sm:$0xff] %v791
  %s801 = scalar_lea.vmem %s1, 8
  %v802 = vld [vmem:[%s801] sm:$0xff]
  %s803 = scalar_lea.vmem %s1, 24
  %v804 = vld [vmem:[%s803] sm:$0xff]
  %v805 = vld [vmem:[#allocation3] sm:$0xff]
  %v807 = vsel %vm107, %v802, 0
  %809 = vmatpush.msra.mxu0 0.0
  %810 = vmatpush.msra.mxu0 0.0
  %811 = vmatpush.msra.mxu0 0.0
  %812 = vmatpush.msra.mxu0 0.0
  %813 = vmatpush.msra.mxu0 0.0
  %814 = vmatpush.msra.mxu0 0.0
  %815 = vmatpush.msra.mxu0 0.0
  %816 = vmatpush.msra.mxu0 0.0
  %817 = vmatpush.msra.mxu0 0.0
  %818 = vmatpush.msra.mxu0 0.0
  %819 = vmatpush.msra.mxu0 0.0
  %820 = vmatpush.msra.mxu0 0.0
  %821 = vmatpush.msra.mxu0 %v717
  %822 = vmatpush.msra.mxu0 %v716
  %823 = vmatpush.msra.mxu0 %v715
  %824 = vmatpush.msra.mxu0 %v714
  %825 = vmatmul.f32.gmra.mxu0 %v807
  %v826 = vpop.f32.mrf.mxu0
  %v827 = vadd.f32 0.0, %v826
  %828 = vdwg.mxu0
  %v829 = vadd.f32 %v805, %v827
  %v830 = vmul.f32 %v829, %v194
  %v831 = vtanh.pop %v830
  %v832 = vmul.f32 %v194, %v831
  %v833 = vadd.f32 %v832, %v195
  %835 = vrot.lane.b32.xlu0 %v804, 32
  %v836 = vpop.permute.xlu0 %835
  %v838 = vmul.f32 %v833, %v836
  %840 = vrot.lane.b32.xlu0 %v833, 64
  %v841 = vpop.permute.xlu0 %840
  %v843 = vmul.f32 %v833, %v841
  %845 = vrot.lane.b32.xlu0 %v843, 32
  %v846 = vpop.permute.xlu0 %845
  %v848 = vadd.f32 %v838, %v846
  %v849 = vtanh.pop %v848
  %851 = vrot.lane.b32.xlu0 %v849, 64
  %v852 = vpop.permute.xlu0 %851
  %v854 = vmul.f32 %v833, %v852
  %856 = vrot.lane.b32.xlu0 %v854, 32
  %v857 = vpop.permute.xlu0 %856
  %859 = vst.msk [vmem:[#allocation2] sm:$0xff] %vm107, %v857
  %v860 = vld [vmem:[%s345] sm:$0xff]
  %v861 = vsel %vm107, %v857, 0
  %863 = vmatpush.msra.mxu0 0.0
  %864 = vmatpush.msra.mxu0 0.0
  %865 = vmatpush.msra.mxu0 0.0
  %866 = vmatpush.msra.mxu0 0.0
  %867 = vmatpush.msra.mxu0 0.0
  %868 = vmatpush.msra.mxu0 0.0
  %869 = vmatpush.msra.mxu0 0.0
  %870 = vmatpush.msra.mxu0 0.0
  %871 = vmatpush.msra.mxu0 0.0
  %872 = vmatpush.msra.mxu0 0.0
  %873 = vmatpush.msra.mxu0 0.0
  %874 = vmatpush.msra.mxu0 0.0
  %875 = vmatpush.msra.mxu0 %v717
  %876 = vmatpush.msra.mxu0 %v716
  %877 = vmatpush.msra.mxu0 %v715
  %878 = vmatpush.msra.mxu0 %v714
  %879 = vmatmul.f32.gmra.mxu0 %v861
  %v880 = vpop.f32.mrf.mxu0
  %v881 = vadd.f32 0.0, %v880
  %882 = vdwg.mxu0
  %v883 = vadd.f32 %v860, %v881
  %v884 = vmul.f32 %v883, %v194
  %v885 = vtanh.pop %v884
  %v886 = vmul.f32 %v194, %v885
  %v887 = vadd.f32 %v886, %v195
  %v888 = vmul.f32 %v887, %v848
  %890 = vrot.lane.b32.xlu0 %v887, 64
  %v891 = vpop.permute.xlu0 %890
  %v893 = vmul.f32 %v887, %v891
  %895 = vrot.lane.b32.xlu0 %v893, 32
  %v896 = vpop.permute.xlu0 %895
  %v898 = vadd.f32 %v888, %v896
  %v899 = vtanh.pop %v898
  %901 = vrot.lane.b32.xlu0 %v899, 64
  %v902 = vpop.permute.xlu0 %901
  %v904 = vmul.f32 %v887, %v902
  %906 = vrot.lane.b32.xlu0 %v904, 32
  %v907 = vpop.permute.xlu0 %906
  %909 = vst.msk [vmem:[%s395] sm:$0xff] %vm107, %v907
  %v910 = vld [vmem:[%s397] sm:$0xff]
  %v911 = vsel %vm107, %v907, 0
  %913 = vmatpush.msra.mxu0 0.0
  %914 = vmatpush.msra.mxu0 0.0
  %915 = vmatpush.msra.mxu0 0.0
  %916 = vmatpush.msra.mxu0 0.0
  %917 = vmatpush.msra.mxu0 0.0
  %918 = vmatpush.msra.mxu0 0.0
  %919 = vmatpush.msra.mxu0 0.0
  %920 = vmatpush.msra.mxu0 0.0
  %921 = vmatpush.msra.mxu0 0.0
  %922 = vmatpush.msra.mxu0 0.0
  %923 = vmatpush.msra.mxu0 0.0
  %924 = vmatpush.msra.mxu0 0.0
  %925 = vmatpush.msra.mxu0 %v717
  %926 = vmatpush.msra.mxu0 %v716
  %927 = vmatpush.msra.mxu0 %v715
  %928 = vmatpush.msra.mxu0 %v714
  %929 = vmatmul.f32.gmra.mxu0 %v911
  %v930 = vpop.f32.mrf.mxu0
  %v931 = vadd.f32 0.0, %v930
  %932 = vdwg.mxu0
  %v933 = vadd.f32 %v910, %v931
  %v934 = vmul.f32 %v933, %v194
  %v935 = vtanh.pop %v934
  %v936 = vmul.f32 %v194, %v935
  %v937 = vadd.f32 %v936, %v195
  %v938 = vmul.f32 %v937, %v898
  %940 = vrot.lane.b32.xlu0 %v937, 64
  %v941 = vpop.permute.xlu0 %940
  %v943 = vmul.f32 %v937, %v941
  %945 = vrot.lane.b32.xlu0 %v943, 32
  %v946 = vpop.permute.xlu0 %945
  %v948 = vadd.f32 %v938, %v946
  %v949 = vtanh.pop %v948
  %951 = vrot.lane.b32.xlu0 %v949, 64
  %v952 = vpop.permute.xlu0 %951
  %v954 = vmul.f32 %v937, %v952
  %956 = vrot.lane.b32.xlu0 %v954, 32
  %v957 = vpop.permute.xlu0 %956
  %959 = vst.msk [vmem:[%s447] sm:$0xff] %vm107, %v957
  %v960 = vld [vmem:[%s449] sm:$0xff]
  %v961 = vsel %vm107, %v957, 0
  %963 = vmatpush.msra.mxu0 0.0
  %964 = vmatpush.msra.mxu0 0.0
  %965 = vmatpush.msra.mxu0 0.0
  %966 = vmatpush.msra.mxu0 0.0
  %967 = vmatpush.msra.mxu0 0.0
  %968 = vmatpush.msra.mxu0 0.0
  %969 = vmatpush.msra.mxu0 0.0
  %970 = vmatpush.msra.mxu0 0.0
  %971 = vmatpush.msra.mxu0 0.0
  %972 = vmatpush.msra.mxu0 0.0
  %973 = vmatpush.msra.mxu0 0.0
  %974 = vmatpush.msra.mxu0 0.0
  %975 = vmatpush.msra.mxu0 %v717
  %976 = vmatpush.msra.mxu0 %v716
  %977 = vmatpush.msra.mxu0 %v715
  %978 = vmatpush.msra.mxu0 %v714
  %979 = vmatmul.f32.gmra.mxu0 %v961
  %v980 = vpop.f32.mrf.mxu0
  %v981 = vadd.f32 0.0, %v980
  %982 = vdwg.mxu0
  %v983 = vadd.f32 %v960, %v981
  %v984 = vmul.f32 %v983, %v194
  %v985 = vtanh.pop %v984
  %v986 = vmul.f32 %v194, %v985
  %v987 = vadd.f32 %v986, %v195
  %v988 = vmul.f32 %v987, %v948
  %990 = vrot.lane.b32.xlu0 %v987, 64
  %v991 = vpop.permute.xlu0 %990
  %v993 = vmul.f32 %v987, %v991
  %995 = vrot.lane.b32.xlu0 %v993, 32
  %v996 = vpop.permute.xlu0 %995
  %v998 = vadd.f32 %v988, %v996
  %v999 = vtanh.pop %v998
  %1001 = vrot.lane.b32.xlu0 %v999, 64
  %v1002 = vpop.permute.xlu0 %1001
  %v1004 = vmul.f32 %v987, %v1002
  %1006 = vrot.lane.b32.xlu0 %v1004, 32
  %v1007 = vpop.permute.xlu0 %1006
  %1009 = vst.msk [vmem:[%s499] sm:$0xff] %vm107, %v1007
  %v1010 = vld [vmem:[%s501] sm:$0xff]
  %v1011 = vsel %vm107, %v1007, 0
  %1013 = vmatpush.msra.mxu0 0.0
  %1014 = vmatpush.msra.mxu0 0.0
  %1015 = vmatpush.msra.mxu0 0.0
  %1016 = vmatpush.msra.mxu0 0.0
  %1017 = vmatpush.msra.mxu0 0.0
  %1018 = vmatpush.msra.mxu0 0.0
  %1019 = vmatpush.msra.mxu0 0.0
  %1020 = vmatpush.msra.mxu0 0.0
  %1021 = vmatpush.msra.mxu0 0.0
  %1022 = vmatpush.msra.mxu0 0.0
  %1023 = vmatpush.msra.mxu0 0.0
  %1024 = vmatpush.msra.mxu0 0.0
  %1025 = vmatpush.msra.mxu0 %v717
  %1026 = vmatpush.msra.mxu0 %v716
  %1027 = vmatpush.msra.mxu0 %v715
  %1028 = vmatpush.msra.mxu0 %v714
  %1029 = vmatmul.f32.gmra.mxu0 %v1011
  %v1030 = vpop.f32.mrf.mxu0
  %v1031 = vadd.f32 0.0, %v1030
  %1032 = vdwg.mxu0
  %v1033 = vadd.f32 %v1010, %v1031
  %v1034 = vmul.f32 %v1033, %v194
  %v1035 = vtanh.pop %v1034
  %v1036 = vmul.f32 %v194, %v1035
  %v1037 = vadd.f32 %v1036, %v195
  %v1038 = vmul.f32 %v1037, %v998
  %1040 = vrot.lane.b32.xlu0 %v1037, 64
  %v1041 = vpop.permute.xlu0 %1040
  %v1043 = vmul.f32 %v1037, %v1041
  %1045 = vrot.lane.b32.xlu0 %v1043, 32
  %v1046 = vpop.permute.xlu0 %1045
  %v1048 = vadd.f32 %v1038, %v1046
  %v1049 = vtanh.pop %v1048
  %1051 = vrot.lane.b32.xlu0 %v1049, 64
  %v1052 = vpop.permute.xlu0 %1051
  %v1054 = vmul.f32 %v1037, %v1052
  %1056 = vrot.lane.b32.xlu0 %v1054, 32
  %v1057 = vpop.permute.xlu0 %1056
  %1059 = vst.msk [vmem:[%s551] sm:$0xff] %vm107, %v1057
  %v1060 = vld [vmem:[%s553] sm:$0xff]
  %v1061 = vsel %vm107, %v1057, 0
  %1063 = vmatpush.msra.mxu0 0.0
  %1064 = vmatpush.msra.mxu0 0.0
  %1065 = vmatpush.msra.mxu0 0.0
  %1066 = vmatpush.msra.mxu0 0.0
  %1067 = vmatpush.msra.mxu0 0.0
  %1068 = vmatpush.msra.mxu0 0.0
  %1069 = vmatpush.msra.mxu0 0.0
  %1070 = vmatpush.msra.mxu0 0.0
  %1071 = vmatpush.msra.mxu0 0.0
  %1072 = vmatpush.msra.mxu0 0.0
  %1073 = vmatpush.msra.mxu0 0.0
  %1074 = vmatpush.msra.mxu0 0.0
  %1075 = vmatpush.msra.mxu0 %v717
  %1076 = vmatpush.msra.mxu0 %v716
  %1077 = vmatpush.msra.mxu0 %v715
  %1078 = vmatpush.msra.mxu0 %v714
  %1079 = vmatmul.f32.gmra.mxu0 %v1061
  %v1080 = vpop.f32.mrf.mxu0
  %v1081 = vadd.f32 0.0, %v1080
  %1082 = vdwg.mxu0
  %v1083 = vadd.f32 %v1060, %v1081
  %v1084 = vmul.f32 %v1083, %v194
  %v1085 = vtanh.pop %v1084
  %v1086 = vmul.f32 %v194, %v1085
  %v1087 = vadd.f32 %v1086, %v195
  %v1088 = vmul.f32 %v1087, %v1048
  %1090 = vrot.lane.b32.xlu0 %v1087, 64
  %v1091 = vpop.permute.xlu0 %1090
  %v1093 = vmul.f32 %v1087, %v1091
  %1095 = vrot.lane.b32.xlu0 %v1093, 32
  %v1096 = vpop.permute.xlu0 %1095
  %v1098 = vadd.f32 %v1088, %v1096
  %v1099 = vtanh.pop %v1098
  %1101 = vrot.lane.b32.xlu0 %v1099, 64
  %v1102 = vpop.permute.xlu0 %1101
  %v1104 = vmul.f32 %v1087, %v1102
  %1106 = vrot.lane.b32.xlu0 %v1104, 32
  %v1107 = vpop.permute.xlu0 %1106
  %1109 = vst.msk [vmem:[%s603] sm:$0xff] %vm107, %v1107
  %v1110 = vld [vmem:[%s605] sm:$0xff]
  %v1111 = vsel %vm107, %v1107, 0
  %1113 = vmatpush.msra.mxu0 0.0
  %1114 = vmatpush.msra.mxu0 0.0
  %1115 = vmatpush.msra.mxu0 0.0
  %1116 = vmatpush.msra.mxu0 0.0
  %1117 = vmatpush.msra.mxu0 0.0
  %1118 = vmatpush.msra.mxu0 0.0
  %1119 = vmatpush.msra.mxu0 0.0
  %1120 = vmatpush.msra.mxu0 0.0
  %1121 = vmatpush.msra.mxu0 0.0
  %1122 = vmatpush.msra.mxu0 0.0
  %1123 = vmatpush.msra.mxu0 0.0
  %1124 = vmatpush.msra.mxu0 0.0
  %1125 = vmatpush.msra.mxu0 %v717
  %1126 = vmatpush.msra.mxu0 %v716
  %1127 = vmatpush.msra.mxu0 %v715
  %1128 = vmatpush.msra.mxu0 %v714
  %1129 = vmatmul.f32.gmra.mxu0 %v1111
  %v1130 = vpop.f32.mrf.mxu0
  %v1131 = vadd.f32 0.0, %v1130
  %1132 = vdwg.mxu0
  %v1133 = vadd.f32 %v1110, %v1131
  %v1134 = vmul.f32 %v1133, %v194
  %v1135 = vtanh.pop %v1134
  %v1136 = vmul.f32 %v194, %v1135
  %v1137 = vadd.f32 %v1136, %v195
  %v1138 = vmul.f32 %v1137, %v1098
  %1140 = vrot.lane.b32.xlu0 %v1137, 64
  %v1141 = vpop.permute.xlu0 %1140
  %v1143 = vmul.f32 %v1137, %v1141
  %1145 = vrot.lane.b32.xlu0 %v1143, 32
  %v1146 = vpop.permute.xlu0 %1145
  %v1148 = vadd.f32 %v1138, %v1146
  %v1149 = vtanh.pop %v1148
  %1151 = vrot.lane.b32.xlu0 %v1149, 64
  %v1152 = vpop.permute.xlu0 %1151
  %v1154 = vmul.f32 %v1137, %v1152
  %1156 = vrot.lane.b32.xlu0 %v1154, 32
  %v1157 = vpop.permute.xlu0 %1156
  %1159 = vst.msk [vmem:[%s655] sm:$0xff] %vm107, %v1157
  %v1160 = vld [vmem:[%s657] sm:$0xff]
  %v1161 = vsel %vm107, %v1157, 0
  %1163 = vmatpush.msra.mxu0 0.0
  %1164 = vmatpush.msra.mxu0 0.0
  %1165 = vmatpush.msra.mxu0 0.0
  %1166 = vmatpush.msra.mxu0 0.0
  %1167 = vmatpush.msra.mxu0 0.0
  %1168 = vmatpush.msra.mxu0 0.0
  %1169 = vmatpush.msra.mxu0 0.0
  %1170 = vmatpush.msra.mxu0 0.0
  %1171 = vmatpush.msra.mxu0 0.0
  %1172 = vmatpush.msra.mxu0 0.0
  %1173 = vmatpush.msra.mxu0 0.0
  %1174 = vmatpush.msra.mxu0 0.0
  %1175 = vmatpush.msra.mxu0 %v717
  %1176 = vmatpush.msra.mxu0 %v716
  %1177 = vmatpush.msra.mxu0 %v715
  %1178 = vmatpush.msra.mxu0 %v714
  %1179 = vmatmul.f32.gmra.mxu0 %v1161
  %v1180 = vpop.f32.mrf.mxu0
  %v1181 = vadd.f32 0.0, %v1180
  %1182 = vdwg.mxu0
  %v1183 = vadd.f32 %v1160, %v1181
  %v1184 = vmul.f32 %v1183, %v194
  %v1185 = vtanh.pop %v1184
  %v1186 = vmul.f32 %v194, %v1185
  %v1187 = vadd.f32 %v1186, %v195
  %v1188 = vmul.f32 %v1187, %v1148
  %1190 = vrot.lane.b32.xlu0 %v1187, 64
  %v1191 = vpop.permute.xlu0 %1190
  %v1193 = vmul.f32 %v1187, %v1191
  %1195 = vrot.lane.b32.xlu0 %v1193, 32
  %v1196 = vpop.permute.xlu0 %1195
  %v1198 = vadd.f32 %v1188, %v1196
  %v1199 = vtanh.pop %v1198
  %1201 = vrot.lane.b32.xlu0 %v1199, 64
  %v1202 = vpop.permute.xlu0 %1201
  %v1204 = vmul.f32 %v1187, %v1202
  %1206 = vrot.lane.b32.xlu0 %v1204, 32
  %v1207 = vpop.permute.xlu0 %1206
  %1209 = vst.msk [vmem:[%s707] sm:$0xff] %vm107, %v1207
  %v1210 = vld [vmem:[%s2 + $0x38] sm:$0xff]
  %v1211 = vld [vmem:[%s2 + $0x40] sm:$0xff]
  %v1212 = vld [vmem:[%s2 + $0x48] sm:$0xff]
  %v1213 = vld [vmem:[%s2 + $0x50] sm:$0xff]
  %v1214 = vld [vmem:[%s2 + $0x58] sm:$0x1]
  %v1215 = vld [vmem:[%s2 + $0x60] sm:$0xff]
  %v1216 = vld [vmem:[%s2 + $0x68] sm:$0xff]
  %v1217 = vld [vmem:[%s2 + $0x70] sm:$0xff]
  %v1218 = vld [vmem:[%s2 + $0x78] sm:$0xff]
  %v1219 = vld [vmem:[%s2 + $0x80] sm:$0x1]
  %v1220 = vld [vmem:[#allocation2] sm:$0xff]
  %v1221 = vld [vmem:[#allocation2 + $0x8] sm:$0xff]
  %v1222 = vld [vmem:[#allocation2 + $0x10] sm:$0xff]
  %v1223 = vld [vmem:[#allocation2 + $0x18] sm:$0xff]
  %v1224 = vld [vmem:[#allocation2 + $0x20] sm:$0xff]
  %v1225 = vld [vmem:[#allocation2 + $0x28] sm:$0xff]
  %v1226 = vld [vmem:[#allocation2 + $0x30] sm:$0xff]
  %v1227 = vld [vmem:[#allocation2 + $0x38] sm:$0xff]
  %v1228 = vperm.slane %v1214, 0
  %v1230 = vsel %vm107, %v1220, 0
  %v1233 = vsel %vm107, %v1221, 0
  %v1236 = vsel %vm107, %v1222, 0
  %v1239 = vsel %vm107, %v1223, 0
  %v1242 = vsel %vm107, %v1224, 0
  %v1245 = vsel %vm107, %v1225, 0
  %v1248 = vsel %vm107, %v1226, 0
  %v1251 = vsel %vm107, %v1227, 0
  %1253 = vmatpush.msra.mxu0 0.0
  %1254 = vmatpush.msra.mxu0 0.0
  %1255 = vmatpush.msra.mxu0 0.0
  %1256 = vmatpush.msra.mxu0 0.0
  %1257 = vmatpush.msra.mxu0 0.0
  %1258 = vmatpush.msra.mxu0 0.0
  %1259 = vmatpush.msra.mxu0 0.0
  %1260 = vmatpush.msra.mxu0 0.0
  %1261 = vmatpush.msra.mxu0 0.0
  %1262 = vmatpush.msra.mxu0 0.0
  %1263 = vmatpush.msra.mxu0 0.0
  %1264 = vmatpush.msra.mxu0 0.0
  %1265 = vmatpush.msra.mxu0 %v1213
  %1266 = vmatpush.msra.mxu0 %v1212
  %1267 = vmatpush.msra.mxu0 %v1211
  %1268 = vmatpush.msra.mxu0 %v1210
  %1269 = vmatmul.f32.gmra.mxu0 %v1230
  %v1270 = vpop.f32.mrf.mxu0
  %v1271 = vadd.f32 %v1228, %v1270
  %1272 = vmatmul.f32.gmra.mxu0 %v1233
  %v1273 = vpop.f32.mrf.mxu0
  %v1274 = vadd.f32 %v1228, %v1273
  %1275 = vmatmul.f32.gmra.mxu0 %v1236
  %v1276 = vpop.f32.mrf.mxu0
  %v1277 = vadd.f32 %v1228, %v1276
  %1278 = vmatmul.f32.gmra.mxu0 %v1239
  %v1279 = vpop.f32.mrf.mxu0
  %v1280 = vadd.f32 %v1228, %v1279
  %1281 = vmatmul.f32.gmra.mxu0 %v1242
  %v1282 = vpop.f32.mrf.mxu0
  %v1283 = vadd.f32 %v1228, %v1282
  %1284 = vmatmul.f32.gmra.mxu0 %v1245
  %v1285 = vpop.f32.mrf.mxu0
  %v1286 = vadd.f32 %v1228, %v1285
  %1287 = vmatmul.f32.gmra.mxu0 %v1248
  %v1288 = vpop.f32.mrf.mxu0
  %v1289 = vadd.f32 %v1228, %v1288
  %1290 = vmatmul.f32.gmra.mxu0 %v1251
  %v1291 = vpop.f32.mrf.mxu0
  %v1292 = vadd.f32 %v1228, %v1291
  %1293 = vdwg.mxu0
  %v1294 = vmax.f32 %v1271, 0.0
  %v1295 = vmax.f32 %v1274, 0.0
  %v1296 = vmax.f32 %v1277, 0.0
  %v1297 = vmax.f32 %v1280, 0.0
  %v1298 = vmax.f32 %v1283, 0.0
  %v1299 = vmax.f32 %v1286, 0.0
  %v1300 = vmax.f32 %v1289, 0.0
  %v1301 = vmax.f32 %v1292, 0.0
  %v1302 = vperm.slane %v1219, 0
  %v1304 = vsel %vm107, %v1294, 0
  %v1307 = vsel %vm107, %v1295, 0
  %v1310 = vsel %vm107, %v1296, 0
  %v1313 = vsel %vm107, %v1297, 0
  %v1316 = vsel %vm107, %v1298, 0
  %v1319 = vsel %vm107, %v1299, 0
  %v1322 = vsel %vm107, %v1300, 0
  %v1325 = vsel %vm107, %v1301, 0
  %1327 = vmatpush.msra.mxu0 0.0
  %1328 = vmatpush.msra.mxu0 0.0
  %1329 = vmatpush.msra.mxu0 0.0
  %1330 = vmatpush.msra.mxu0 0.0
  %1331 = vmatpush.msra.mxu0 0.0
  %1332 = vmatpush.msra.mxu0 0.0
  %1333 = vmatpush.msra.mxu0 0.0
  %1334 = vmatpush.msra.mxu0 0.0
  %1335 = vmatpush.msra.mxu0 0.0
  %1336 = vmatpush.msra.mxu0 0.0
  %1337 = vmatpush.msra.mxu0 0.0
  %1338 = vmatpush.msra.mxu0 0.0
  %1339 = vmatpush.msra.mxu0 %v1218
  %1340 = vmatpush.msra.mxu0 %v1217
  %1341 = vmatpush.msra.mxu0 %v1216
  %1342 = vmatpush.msra.mxu0 %v1215
  %1343 = vmatmul.f32.gmra.mxu0 %v1304
  %v1344 = vpop.f32.mrf.mxu0
  %v1345 = vadd.f32 %v1302, %v1344
  %1346 = vmatmul.f32.gmra.mxu0 %v1307
  %v1347 = vpop.f32.mrf.mxu0
  %v1348 = vadd.f32 %v1302, %v1347
  %1349 = vmatmul.f32.gmra.mxu0 %v1310
  %v1350 = vpop.f32.mrf.mxu0
  %v1351 = vadd.f32 %v1302, %v1350
  %1352 = vmatmul.f32.gmra.mxu0 %v1313
  %v1353 = vpop.f32.mrf.mxu0
  %v1354 = vadd.f32 %v1302, %v1353
  %1355 = vmatmul.f32.gmra.mxu0 %v1316
  %v1356 = vpop.f32.mrf.mxu0
  %v1357 = vadd.f32 %v1302, %v1356
  %1358 = vmatmul.f32.gmra.mxu0 %v1319
  %v1359 = vpop.f32.mrf.mxu0
  %v1360 = vadd.f32 %v1302, %v1359
  %1361 = vmatmul.f32.gmra.mxu0 %v1322
  %v1362 = vpop.f32.mrf.mxu0
  %v1363 = vadd.f32 %v1302, %v1362
  %1364 = vmatmul.f32.gmra.mxu0 %v1325
  %v1365 = vpop.f32.mrf.mxu0
  %v1366 = vadd.f32 %v1302, %v1365
  %1367 = vdwg.mxu0
  %1368 = vst [vmem:[%s4] sm:$0xff] %v1345
  %1369 = vst [vmem:[%s4 + $0x8] sm:$0xff] %v1348
  %1370 = vst [vmem:[%s4 + $0x10] sm:$0xff] %v1351
  %1371 = vst [vmem:[%s4 + $0x18] sm:$0xff] %v1354
  %1372 = vst [vmem:[%s4 + $0x20] sm:$0xff] %v1357
  %1373 = vst [vmem:[%s4 + $0x28] sm:$0xff] %v1360
  %1374 = vst [vmem:[%s4 + $0x30] sm:$0xff] %v1363
  %1375 = vst [vmem:[%s4 + $0x38] sm:$0xff] %v1366
  // Predicated region
  $region18: #{decoder_forward.1} parent=0 // pred_check
    _
  $region19: #{decoder_forward.1} parent=0 // pred_check_branch
    %1377 = sbr.rel (0) target = $region21
  $region20: #{decoder_forward.1} parent=0 // pred_region
    _
  $region21: #{decoder_forward.1} parent=0 // pred_fallthru
    _
  // Predicated region
  $region22: #{decoder_forward.1} parent=0 // pred_check
    _
  $region23: #{decoder_forward.1} parent=0 // pred_check_branch
    %1379 = sbr.rel (0) target = $region25
  $region24: #{decoder_forward.1} parent=0 // pred_region
    _
  $region25: #{decoder_forward.1} parent=0 // pred_fallthru
    _

</llo_original>
